<compile_context>
chip_gen: v7x
topology: tpu7x:2x2x1
jax: 0.10.0
libtpu: 0.0.40
codegen_flags: <defaults>
</compile_context>

<pallas_src>
from functools import partial
import math

import jax
import jax.numpy as jnp
from jax import lax
from jax.experimental import pallas as pl
from jax.experimental.pallas import tpu as pltpu


def _cdiv(a, b):
    return -(-a // b)


def _hardswish(x):
    # nn.Hardswish: x * relu6(x + 3) / 6
    return x * jnp.clip(x + 3.0, 0.0, 6.0) * (1.0 / 6.0)


def _leaky(x):
    return jnp.where(x > 0, x, 0.1 * x)


# ---------------------------------------------------------------------------
# One-time probe: is pltpu.roll usable (and jnp.roll-compatible) here?
# ---------------------------------------------------------------------------
_ROLL_OK = None


def _roll_supported():
    global _ROLL_OK
    if _ROLL_OK is None:
        try:
            def k(x_ref, o_ref):
                o_ref[...] = pltpu.roll(x_ref[...], shift=273, axis=1)

            x = jnp.arange(16 * 384, dtype=jnp.float32).reshape(16, 384)
            y = pl.pallas_call(
                k, out_shape=jax.ShapeDtypeStruct((16, 384), jnp.float32))(x)
            _ROLL_OK = bool(jnp.array_equal(y, jnp.roll(x, 273, axis=1)))
        except Exception:
            _ROLL_OK = False
    return _ROLL_OK


# ---------------------------------------------------------------------------
# Kernel
# ---------------------------------------------------------------------------
def _make_kernel(T, B, HALO, W, hid, chain, use_roll):
    """T: interior pixels per tile (multiple of 128 and of W).
    B = T + 2*HALO window width; HALO: halo columns (multiple of 128, >= W).
    chain: double-buffer the window DMA along the (sequential) tile axis.
    use_roll: XLU rolls for the 3x3 taps, else unaligned-slice fallback."""

    def kernel(x_hbm, valid_ref, mm_ref, mp_ref,
               w12_ref, b1_ref, bbn2_ref,
               wb1_ref, bb1_ref, wb2_ref, bb2_ref,
               w3_ref, bbn1_ref, w4a_ref, w4b_ref, b4_ref,
               o_ref, xbuf, sem):
        n = pl.program_id(0)
        ti = pl.program_id(1)
        nt = pl.num_programs(1)
        slot = lax.rem(ti, 2)

        def window_copy(tile, dst_slot):
            col = pl.multiple_of(tile * T, 128)
            return pltpu.make_async_copy(
                x_hbm.at[n, :, pl.ds(col, B)], xbuf.at[dst_slot],
                sem.at[dst_slot])

        if chain:
            # Tile axis is sequential per core: step ti prefetches ti+1 of the
            # same image; ti == 0 fetches its own window (chain reset per n).
            @pl.when(ti == 0)
            def _():
                window_copy(ti, slot).start()

            @pl.when(ti + 1 < nt)
            def _():
                window_copy(ti + 1, 1 - slot).start()
        else:
            window_copy(ti, slot).start()

        window_copy(ti, slot).wait()
        xh = xbuf[slot]                                         # (Cin, B) bf16

        # CSP conv1 + CSP conv2 (both 1x1, same RHS, BN scales folded):
        # one merged matmul, rows split afterwards.
        hh = jnp.dot(w12_ref[...], xh,
                     preferred_element_type=jnp.float32)        # (2*hid, B)
        h = _hardswish(hh[:hid] + b1_ref[...])                  # (hid, B)

        # -------- BottleneckStd (expansion=1.0, shortcut=True) --------
        t = _hardswish(jnp.dot(wb1_ref[...], h.astype(jnp.bfloat16),
                               preferred_element_type=jnp.float32)
                       + bb1_ref[...])                          # (hid, B)

        # Zero-pad semantics of the 3x3 conv: kill out-of-image columns
        # (per-tile mask input; only edge tiles carry zeros).
        t = t * valid_ref[0]
        t_m = t * mm_ref[...]   # source columns usable by dx = -1 taps
        t_p = t * mp_ref[...]   # source columns usable by dx = +1 taps

        # conv2: 3x3, stride 1, pad 1 -> 9 lane shifts + ONE im2col matmul.
        pieces = []
        for dy in (-1, 0, 1):
            for dx in (-1, 0, 1):
                src = t_m if dx == -1 else (t_p if dx == 1 else t)
                off = HALO + dy * W + dx                        # static, in (0, 2*HALO)
                if use_roll:
                    shifted = pltpu.roll(src, shift=(B - off) % B, axis=1)
                    pieces.append(shifted[:, :T])               # lane-aligned slice
                else:
                    pieces.append(src[:, off:off + T])          # fallback (relayout)
        stack = jnp.concatenate(pieces, axis=0).astype(jnp.bfloat16)   # (9*hid, T)

        t2 = _hardswish(jnp.dot(wb2_ref[...], stack,
                                preferred_element_type=jnp.float32)
                        + bb2_ref[...])                         # (hid, T)

        h_int = h[:, HALO:HALO + T] + t2                        # residual (aligned)
        # ----------------------------------------------------------------

        # y1: conv3 (1x1, BN-top scale folded) -> LeakyReLU(0.1)
        y1 = _leaky(jnp.dot(w3_ref[...], h_int.astype(jnp.bfloat16),
                            preferred_element_type=jnp.float32)
                    + bbn1_ref[...])
        # y2: conv2 (1x1, BN-bottom scale folded) -> LeakyReLU(0.1)
        #     (matmul already done inside hh; aligned interior slice).
        y2 = _leaky(hh[hid:, HALO:HALO + T] + bbn2_ref[...])

        # conv4 on split weights (no channel concat) + folded BN + Hardswish.
        out = _hardswish(jnp.dot(w4a_ref[...], y1.astype(jnp.bfloat16),
                                 preferred_element_type=jnp.float32)
                         + jnp.dot(w4b_ref[...], y2.astype(jnp.bfloat16),
                                   preferred_element_type=jnp.float32)
                         + b4_ref[...])                         # (Cout, T)
        o_ref[0] = out.astype(o_ref.dtype)

    return kernel


# ---------------------------------------------------------------------------
# Wrapper-side parameter folding (inference BN semantics)
# ---------------------------------------------------------------------------
def _fold_params(p, eps=1e-5):
    def fold(bn):
        s = bn["gamma"] / jnp.sqrt(bn["var"] + eps)
        return s, bn["beta"] - bn["mean"] * s

    s1, b1 = fold(p["csp_conv1_bn"])
    sb1, bb1 = fold(p["std_conv1_bn"])
    sb2, bb2 = fold(p["std_conv2_bn"])
    sbn, bbn = fold(p["bn"])
    s4, b4 = fold(p["conv4_bn"])
    hid = p["std_conv1_w"].shape[0]

    def bf(x):
        return x.astype(jnp.bfloat16)

    def col(x):
        return x[:, None].astype(jnp.float32)

    w1 = p["csp_conv1_w"] * s1[:, None]                 # (hid, Cin)
    w2 = p["conv2_w"] * sbn[hid:, None]                 # (hid, Cin)
    w12 = bf(jnp.concatenate([w1, w2], axis=0))         # merged RHS-sharing matmul

    wb1 = bf(p["std_conv1_w"] * sb1[:, None])
    w33 = p["std_conv2_w"] * sb2[:, None, None, None]   # (O, I, 3, 3)
    wb2 = bf(jnp.transpose(w33, (0, 2, 3, 1)).reshape(hid, 9 * hid))
    w3 = bf(p["conv3_w"] * sbn[:hid, None])
    w4 = p["conv4_w"] * s4[:, None]
    w4a, w4b = bf(w4[:, :hid]), bf(w4[:, hid:])

    return (w12, col(b1), col(bbn[hid:]),
            wb1, col(bb1), wb2, col(bb2),
            w3, col(bbn[:hid]), w4a, w4b, col(b4))


# ---------------------------------------------------------------------------
# VMEM budget + tile selection
# ---------------------------------------------------------------------------
def _vmem_budget():
    try:
        cap = int(pltpu.get_tpu_info().vmem_capacity_bytes)
    except Exception:
        cap = 64 * 1024 * 1024          # conservative (v7x per-core VMEM)
    limit = min(int(cap * 0.75), 100 * 1024 * 1024)
    return limit, int(limit * 0.55)


def _halo(W):
    return ((W + 127) // 128) * 128


def _choose_tile_t(H, W, N, Cin, hid, Cout, budget_bytes, out_bytes=4):
    HW = H * W
    L = (W * 128) // math.gcd(W, 128)           # tile quantum: lcm(W, 128) pixels
    n_units = _cdiv(HW, L)
    HALO = _halo(W)

    def est(T):
        B = T + 2 * HALO
        return (2 * 2 * Cin * B                 # bf16 window, 2 slots
                + 4 * B * (2 * hid)             # hh
                + 4 * B * (3 * hid)             # t, t_m, t_p (h aliases hh rows)
                + 4 * T * (9 * hid)             # shifted pieces (f32)
                + 2 * T * (9 * hid)             # bf16 im2col stack
                + 4 * T * (4 * hid)             # t2, h_int, y1, y2
                + 4 * T * Cout                  # f32 out tile
                + 2 * out_bytes * T * Cout      # output block (double-buffered)
                + 2 * 4 * 3 * B                 # valid / dx masks
                + 4 * 2 * (2 * hid * Cin + 11 * hid * hid + 2 * Cout * hid)
                + (2 << 20))                    # compiler scratch slack

    k = next((kk for kk in range(n_units, 0, -1) if est(kk * L) <= budget_bytes), 1)
    # v7x megacore: with no batch parallelism prefer >= 2 tiles so both
    # TensorCores get work.
    if N == 1 and n_units >= 2 and _cdiv(n_units, k) < 2:
        k = _cdiv(n_units, 2)
    return k * L, HALO


# ---------------------------------------------------------------------------
# Forward wrapper
# ---------------------------------------------------------------------------
@partial(jax.jit, static_argnames=("T", "HALO", "chain", "use_roll",
                                   "vmem_limit", "out_dtype"))
def _forward_impl(x_nchw, params, *, T, HALO, chain, use_roll, vmem_limit,
                  out_dtype):
    N, Cin, H, W = x_nchw.shape
    hid = params["std_conv1_w"].shape[0]
    Cout = params["conv4_w"].shape[0]
    HW = H * W
    n_tiles = _cdiv(HW, T)
    HW_pad = n_tiles * T
    B = T + 2 * HALO

    # Padded channels-major activation, kept in HBM; the kernel DMAs each
    # overlapping (Cin, B) window itself (no halo-duplication pre-pass).
    x3 = x_nchw.reshape(N, Cin, HW).astype(jnp.bfloat16)
    xp = jnp.pad(x3, ((0, 0), (0, 0), (HALO, HALO + HW_pad - HW)))

    # Hoisted masks (tiny constants; no per-step iota/mod in the kernel).
    c = jnp.arange(B, dtype=jnp.int32)
    xcoord = (c - HALO) % W
    mask_m = (xcoord != W - 1).astype(jnp.float32)[None, :]       # dx = -1 sources
    mask_p = (xcoord != 0).astype(jnp.float32)[None, :]           # dx = +1 sources
    g = jnp.arange(n_tiles, dtype=jnp.int32)[:, None] * T + c[None, :] - HALO
    valid = ((g >= 0) & (g < HW)).astype(jnp.float32)[:, None, :]  # (n_tiles,1,B)

    folded = _fold_params(params)

    def _const(a):
        return pl.BlockSpec(a.shape, lambda n, t: (0,) * a.ndim)

    in_specs = [pl.BlockSpec(memory_space=pl.ANY),                 # padded x (HBM)
                pl.BlockSpec((1, 1, B), lambda n, t: (t, 0, 0)),   # per-tile valid
                _const(mask_m), _const(mask_p)]
    in_specs += [_const(a) for a in folded]

    dims = ("parallel", "arbitrary") if chain else ("parallel", "parallel")

    out = pl.pallas_call(
        _make_kernel(T, B, HALO, W, hid, chain, use_roll),
        out_shape=jax.ShapeDtypeStruct((N, Cout, HW_pad), out_dtype),
        grid=(N, n_tiles),
        in_specs=in_specs,
        out_specs=pl.BlockSpec((1, Cout, T), lambda n, t: (n, 0, t)),
        scratch_shapes=[pltpu.VMEM((2, Cin, B), jnp.bfloat16),
                        pltpu.SemaphoreType.DMA((2,))],
        compiler_params=pltpu.CompilerParams(
            dimension_semantics=dims,
            vmem_limit_bytes=vmem_limit),
    )(xp, valid, mask_m, mask_p, *folded)

    return out[:, :, :HW].reshape(N, Cout, H, W)


def bottleneck_csp_forward(x_nchw, params, tile_h=None, out_dtype=jnp.float32):
    N, Cin, H, W = x_nchw.shape
    hid = params["std_conv1_w"].shape[0]
    Cout = params["conv4_w"].shape[0]

    vmem_limit, budget = _vmem_budget()
    if tile_h is None:
        T, HALO = _choose_tile_t(H, W, N, Cin, hid, Cout, budget,
                                 out_bytes=jnp.dtype(out_dtype).itemsize)
    else:
        T = tile_h * W
        HALO = _halo(W)
        assert T % 128 == 0, "tile_h * W must be a multiple of 128"

    n_tiles = _cdiv(H * W, T)
    # Chain (double-buffer) the window DMA along the tile axis only when the
    # batch axis already provides cross-core parallelism; otherwise keep both
    # grid axes "parallel" (v7x dual-TC) with a per-step synchronous fetch.
    chain = (N >= 2) and (n_tiles >= 2)
    use_roll = _roll_supported()

    return _forward_impl(x_nchw, params, T=T, HALO=HALO, chain=chain,
                         use_roll=use_roll, vmem_limit=vmem_limit,
                         out_dtype=out_dtype)


# ---------------------------------------------------------------------------
# Parameters (PyTorch-like raw params) and pure-JAX reference
# ---------------------------------------------------------------------------
def init_params(key, Cin, Cout, expansion=0.5):
    hid = int(Cout * expansion)
    keys = iter(jax.random.split(key, 16))

    def w(shape, fan_in):
        return jax.random.normal(next(keys), shape, jnp.float32) / jnp.sqrt(float(fan_in))

    def bn(c):
        k = jax.random.split(next(keys), 4)
        return {"gamma": 1.0 + 0.1 * jax.random.normal(k[0], (c,), jnp.float32),
                "beta": 0.1 * jax.random.normal(k[1], (c,), jnp.float32),
                "mean": 0.1 * jax.random.normal(k[2], (c,), jnp.float32),
                "var": jax.random.uniform(k[3], (c,), jnp.float32,
                                          minval=0.5, maxval=1.5)}

    return {
        "csp_conv1_w": w((hid, Cin), Cin), "csp_conv1_bn": bn(hid),
        "std_conv1_w": w((hid, hid), hid), "std_conv1_bn": bn(hid),
        "std_conv2_w": w((hid, hid, 3, 3), 9 * hid), "std_conv2_bn": bn(hid),
        "conv3_w": w((hid, hid), hid),
        "conv2_w": w((hid, Cin), Cin),
        "bn": bn(2 * hid),
        "conv4_w": w((Cout, 2 * hid), 2 * hid), "conv4_bn": bn(Cout),
    }


def reference_forward(x_nchw, params, eps=1e-5):
    """Pure-JAX (f32, NHWC) reference with eval-mode BatchNorm."""
    x = jnp.transpose(x_nchw, (0, 2, 3, 1)).astype(jnp.float32)

    def bn(v, p):
        s = p["gamma"] / jnp.sqrt(p["var"] + eps)
        return v * s + (p["beta"] - p["mean"] * s)

    def conv1x1(v, w):                      # w: (O, I) PyTorch-style
        return jnp.einsum("nhwc,oc->nhwo", v, w)

    h = _hardswish(bn(conv1x1(x, params["csp_conv1_w"]), params["csp_conv1_bn"]))
    t = _hardswish(bn(conv1x1(h, params["std_conv1_w"]), params["std_conv1_bn"]))
    w33 = jnp.transpose(params["std_conv2_w"], (2, 3, 1, 0))    # OIHW -> HWIO
    t2 = lax.conv_general_dilated(t, w33, (1, 1), "SAME",
                                  dimension_numbers=("NHWC", "HWIO", "NHWC"))
    t2 = _hardswish(bn(t2, params["std_conv2_bn"]))
    h = h + t2
    y1 = conv1x1(h, params["conv3_w"])
    y2 = conv1x1(x, params["conv2_w"])
    y = bn(jnp.concatenate([y1, y2], axis=-1), params["bn"])
    y = jnp.where(y > 0, y, 0.1 * y)
    out = _hardswish(bn(conv1x1(y, params["conv4_w"]), params["conv4_bn"]))
    return jnp.transpose(out, (0, 3, 1, 2))


# ---------------------------------------------------------------------------
# Self-test
# ---------------------------------------------------------------------------
if __name__ == "__main__":
    key = jax.random.PRNGKey(0)
    k1, k2, k3, k4 = jax.random.split(key, 4)

    # Case 1: BottleneckCSP(16, 16), forced 2-row-tile split -> exercises the
    # overlapping-window DMA with chained double-buffering (N=2 -> chain=True).
    N, Cin, Cout, H, W = 2, 16, 16, 16, 16
    x = jax.random.normal(k1, (N, Cin, H, W), jnp.float32)     # NCHW like PyTorch
    params = init_params(k2, Cin, Cout)
    out = jax.block_until_ready(bottleneck_csp_forward(x, params, tile_h=8))
    ref = jax.block_until_ready(reference_forward(x, params))
    assert out.shape == (N, Cout, H, W), out.shape
    if not bool(jnp.allclose(out, ref, rtol=5e-2, atol=5e-2)):
        raise AssertionError(
            f"case1 mismatch, max_abs_err={float(jnp.max(jnp.abs(out - ref)))}")

    # Case 2: different channel config, auto tiling; N=1 -> both grid axes
    # parallel (per-step window fetch, v7x dual-TC friendly), >= 2 tiles.
    N, Cin, Cout, H, W = 1, 8, 32, 16, 16
    x = jax.random.normal(k3, (N, Cin, H, W), jnp.float32)
    params = init_params(k4, Cin, Cout)
    out = jax.block_until_ready(bottleneck_csp_forward(x, params))
    ref = jax.block_until_ready(reference_forward(x, params))
    assert out.shape == (N, Cout, H, W), out.shape
    if not bool(jnp.allclose(out, ref, rtol=5e-2, atol=5e-2)):
        raise AssertionError(
            f"case2 mismatch, max_abs_err={float(jnp.max(jnp.abs(out - ref)))}")

    print("KERNEL_OK")
</pallas_src>

<mosaic_0001>
module attributes {stable_mosaic.version = 11 : i64} {
  func.func @k(%arg0: memref<16x384xf32, #tpu.memory_space<vmem>>, %arg1: memref<16x384xf32, #tpu.memory_space<vmem>>) attributes {dimension_semantics = [], scalar_prefetch = 0 : i64, scratch_operands = 0 : i64, tpu.core_type = #tpu.core_type<tc>} {
    %c0 = arith.constant 0 : index
    %c0_0 = arith.constant 0 : index
    %0 = vector.load %arg0[%c0, %c0_0] : memref<16x384xf32, #tpu.memory_space<vmem>>, vector<16x384xf32>
    %c273_i32 = arith.constant 273 : i32
    %1 = tpu.dynamic_rotate %0 by %c273_i32 dim 1 : vector<16x384xf32>, i32 -> vector<16x384xf32>
    %c0_1 = arith.constant 0 : index
    %c0_2 = arith.constant 0 : index
    %2 = vector.load %arg1[%c0_1, %c0_2] : memref<16x384xf32, #tpu.memory_space<vmem>>, vector<16x384xf32>
    tpu.vector_store %arg1[%c0_1, %c0_2], %1 {strides = array<i32>} : memref<16x384xf32, #tpu.memory_space<vmem>>, vector<16x384xf32>,
    return
  }
}

module attributes {stable_mosaic.version = 11 : i64} {
  func.func @kernel(%arg0: i32, %arg1: i32, %arg2: memref<2x16x512xbf16, #tpu.memory_space<any>>, %arg3: memref<1x1x384xf32, #tpu.memory_space<vmem>>, %arg4: memref<1x384xf32, #tpu.memory_space<vmem>>, %arg5: memref<1x384xf32, #tpu.memory_space<vmem>>, %arg6: memref<16x16xbf16, #tpu.memory_space<vmem>>, %arg7: memref<8x1xf32, #tpu.memory_space<vmem>>, %arg8: memref<8x1xf32, #tpu.memory_space<vmem>>, %arg9: memref<8x8xbf16, #tpu.memory_space<vmem>>, %arg10: memref<8x1xf32, #tpu.memory_space<vmem>>, %arg11: memref<8x72xbf16, #tpu.memory_space<vmem>>, %arg12: memref<8x1xf32, #tpu.memory_space<vmem>>, %arg13: memref<8x8xbf16, #tpu.memory_space<vmem>>, %arg14: memref<8x1xf32, #tpu.memory_space<vmem>>, %arg15: memref<16x8xbf16, #tpu.memory_space<vmem>>, %arg16: memref<16x8xbf16, #tpu.memory_space<vmem>>, %arg17: memref<16x1xf32, #tpu.memory_space<vmem>>, %arg18: memref<1x16x128xf32, #tpu.memory_space<vmem>>, %arg19: memref<2x16x384xbf16, #tpu.memory_space<vmem>>, %arg20: memref<2x!tpu.dma_semaphore, #tpu.memory_space<semaphore_mem>>) attributes {dimension_semantics = [#tpu.dimension_semantics<parallel>, #tpu.dimension_semantics<arbitrary>], iteration_bounds = array<i64: 2, 2>, scalar_prefetch = 0 : i64, scratch_operands = 2 : i64, tpu.core_type = #tpu.core_type<tc>, window_params = [{}, {transform_indices = @transform_1, window_bounds = array<i64: 1, 1, 384>}, {pipeline_mode = #tpu.pipeline_mode<synchronous>, transform_indices = @transform_2, window_bounds = array<i64: 1, 384>}, {pipeline_mode = #tpu.pipeline_mode<synchronous>, transform_indices = @transform_3, window_bounds = array<i64: 1, 384>}, {pipeline_mode = #tpu.pipeline_mode<synchronous>, transform_indices = @transform_4, window_bounds = array<i64: 16, 16>}, {pipeline_mode = #tpu.pipeline_mode<synchronous>, transform_indices = @transform_5, window_bounds = array<i64: 8, 1>}, {pipeline_mode = #tpu.pipeline_mode<synchronous>, transform_indices = @transform_6, window_bounds = array<i64: 8, 1>}, {pipeline_mode = #tpu.pipeline_mode<synchronous>, transform_indices = @transform_7, window_bounds = array<i64: 8, 8>}, {pipeline_mode = #tpu.pipeline_mode<synchronous>, transform_indices = @transform_8, window_bounds = array<i64: 8, 1>}, {pipeline_mode = #tpu.pipeline_mode<synchronous>, transform_indices = @transform_9, window_bounds = array<i64: 8, 72>}, {pipeline_mode = #tpu.pipeline_mode<synchronous>, transform_indices = @transform_10, window_bounds = array<i64: 8, 1>}, {pipeline_mode = #tpu.pipeline_mode<synchronous>, transform_indices = @transform_11, window_bounds = array<i64: 8, 8>}, {pipeline_mode = #tpu.pipeline_mode<synchronous>, transform_indices = @transform_12, window_bounds = array<i64: 8, 1>}, {pipeline_mode = #tpu.pipeline_mode<synchronous>, transform_indices = @transform_13, window_bounds = array<i64: 16, 8>}, {pipeline_mode = #tpu.pipeline_mode<synchronous>, transform_indices = @transform_14, window_bounds = array<i64: 16, 8>}, {pipeline_mode = #tpu.pipeline_mode<synchronous>, transform_indices = @transform_15, window_bounds = array<i64: 16, 1>}, {transform_indices = @transform_16, window_bounds = array<i64: 1, 16, 128>}]} {
    %c2_i32 = arith.constant 2 : i32
    %0 = arith.remsi %arg1, %c2_i32 : i32
    %c0_i32 = arith.constant 0 : i32
    %1 = arith.cmpi eq, %arg1, %c0_i32 : i32
    %2 = arith.extui %1 : i1 to i32
    %c0_i32_0 = arith.constant 0 : i32
    %3 = arith.cmpi ne, %2, %c0_i32_0 : i32
    scf.if %3 {
      %c128_i32_66 = arith.constant 128 : i32
      %128 = arith.muli %arg1, %c128_i32_66 : i32
      %129 = tpu.assume_multiple %128, 128 : i32
      %c0_i32_67 = arith.constant 0 : i32
      %130 = tpu.memref_slice %arg2[%arg0, %c0_i32_67, %129] : memref<2x16x512xbf16, #tpu.memory_space<any>> -> memref<1x16x384xbf16, #tpu.memory_space<any>>
      %131 = tpu.memref_squeeze %130 : memref<1x16x384xbf16, #tpu.memory_space<any>> -> memref<16x384xbf16, #tpu.memory_space<any>>
      %c0_i32_68 = arith.constant 0 : i32
      %c0_i32_69 = arith.constant 0 : i32
      %132 = tpu.memref_slice %arg19[%0, %c0_i32_68, %c0_i32_69] : memref<2x16x384xbf16, #tpu.memory_space<vmem>> -> memref<1x16x384xbf16, #tpu.memory_space<vmem>>
      %133 = tpu.memref_squeeze %132 : memref<1x16x384xbf16, #tpu.memory_space<vmem>> -> memref<16x384xbf16, #tpu.memory_space<vmem>>
      %134 = tpu.memref_slice %arg20[%0] : memref<2x!tpu.dma_semaphore, #tpu.memory_space<semaphore_mem>> -> memref<1x!tpu.dma_semaphore, #tpu.memory_space<semaphore_mem>>
      %135 = tpu.memref_squeeze %134 : memref<1x!tpu.dma_semaphore, #tpu.memory_space<semaphore_mem>> -> memref<!tpu.dma_semaphore, #tpu.memory_space<semaphore_mem>>
      tpu.enqueue_dma source(%131 : memref<16x384xbf16, #tpu.memory_space<any>>) target(%133 : memref<16x384xbf16, #tpu.memory_space<vmem>>) target_semaphore(%135 : memref<!tpu.dma_semaphore, #tpu.memory_space<semaphore_mem>>)
    } else {
    }
    %c1_i32 = arith.constant 1 : i32
    %4 = arith.addi %arg1, %c1_i32 : i32
    %c2_i32_1 = arith.constant 2 : i32
    %5 = arith.cmpi slt, %4, %c2_i32_1 : i32
    %6 = arith.extui %5 : i1 to i32
    %c0_i32_2 = arith.constant 0 : i32
    %7 = arith.cmpi ne, %6, %c0_i32_2 : i32
    scf.if %7 {
      %c1_i32_66 = arith.constant 1 : i32
      %128 = arith.addi %arg1, %c1_i32_66 : i32
      %c1_i32_67 = arith.constant 1 : i32
      %129 = arith.subi %c1_i32_67, %0 : i32
      %c128_i32_68 = arith.constant 128 : i32
      %130 = arith.muli %128, %c128_i32_68 : i32
      %131 = tpu.assume_multiple %130, 128 : i32
      %c0_i32_69 = arith.constant 0 : i32
      %132 = tpu.memref_slice %arg2[%arg0, %c0_i32_69, %131] : memref<2x16x512xbf16, #tpu.memory_space<any>> -> memref<1x16x384xbf16, #tpu.memory_space<any>>
      %133 = tpu.memref_squeeze %132 : memref<1x16x384xbf16, #tpu.memory_space<any>> -> memref<16x384xbf16, #tpu.memory_space<any>>
      %c0_i32_70 = arith.constant 0 : i32
      %c0_i32_71 = arith.constant 0 : i32
      %134 = tpu.memref_slice %arg19[%129, %c0_i32_70, %c0_i32_71] : memref<2x16x384xbf16, #tpu.memory_space<vmem>> -> memref<1x16x384xbf16, #tpu.memory_space<vmem>>
      %135 = tpu.memref_squeeze %134 : memref<1x16x384xbf16, #tpu.memory_space<vmem>> -> memref<16x384xbf16, #tpu.memory_space<vmem>>
      %136 = tpu.memref_slice %arg20[%129] : memref<2x!tpu.dma_semaphore, #tpu.memory_space<semaphore_mem>> -> memref<1x!tpu.dma_semaphore, #tpu.memory_space<semaphore_mem>>
      %137 = tpu.memref_squeeze %136 : memref<1x!tpu.dma_semaphore, #tpu.memory_space<semaphore_mem>> -> memref<!tpu.dma_semaphore, #tpu.memory_space<semaphore_mem>>
      tpu.enqueue_dma source(%133 : memref<16x384xbf16, #tpu.memory_space<any>>) target(%135 : memref<16x384xbf16, #tpu.memory_space<vmem>>) target_semaphore(%137 : memref<!tpu.dma_semaphore, #tpu.memory_space<semaphore_mem>>)
    } else {
    }
    %c128_i32 = arith.constant 128 : i32
    %8 = arith.muli %arg1, %c128_i32 : i32
    %9 = tpu.assume_multiple %8, 128 : i32
    %c0_i32_3 = arith.constant 0 : i32
    %10 = tpu.memref_slice %arg2[%arg0, %c0_i32_3, %9] : memref<2x16x512xbf16, #tpu.memory_space<any>> -> memref<1x16x384xbf16, #tpu.memory_space<any>>
    %11 = tpu.memref_squeeze %10 : memref<1x16x384xbf16, #tpu.memory_space<any>> -> memref<16x384xbf16, #tpu.memory_space<any>>
    %c0_i32_4 = arith.constant 0 : i32
    %c0_i32_5 = arith.constant 0 : i32
    %12 = tpu.memref_slice %arg19[%0, %c0_i32_4, %c0_i32_5] : memref<2x16x384xbf16, #tpu.memory_space<vmem>> -> memref<1x16x384xbf16, #tpu.memory_space<vmem>>
    %13 = tpu.memref_squeeze %12 : memref<1x16x384xbf16, #tpu.memory_space<vmem>> -> memref<16x384xbf16, #tpu.memory_space<vmem>>
    %14 = tpu.memref_slice %arg20[%0] : memref<2x!tpu.dma_semaphore, #tpu.memory_space<semaphore_mem>> -> memref<1x!tpu.dma_semaphore, #tpu.memory_space<semaphore_mem>>
    %15 = tpu.memref_squeeze %14 : memref<1x!tpu.dma_semaphore, #tpu.memory_space<semaphore_mem>> -> memref<!tpu.dma_semaphore, #tpu.memory_space<semaphore_mem>>
    tpu.wait_dma2 semaphore(%15 : memref<!tpu.dma_semaphore, #tpu.memory_space<semaphore_mem>>) src(%11 : memref<16x384xbf16, #tpu.memory_space<any>>) dst(%13 : memref<16x384xbf16, #tpu.memory_space<vmem>>)
    %16 = arith.index_cast %0 : i32 to index
    %c0 = arith.constant 0 : index
    %c0_6 = arith.constant 0 : index
    %17 = vector.load %arg19[%16, %c0, %c0_6] : memref<2x16x384xbf16, #tpu.memory_space<vmem>>, vector<1x16x384xbf16>
    %18 = vector.shape_cast %17 : vector<1x16x384xbf16> to vector<16x384xbf16>
    %c0_7 = arith.constant 0 : index
    %c0_8 = arith.constant 0 : index
    %19 = vector.load %arg6[%c0_7, %c0_8] : memref<16x16xbf16, #tpu.memory_space<vmem>>, vector<16x16xbf16>
    %cst = arith.constant dense<0.000000e+00> : vector<16x384xf32>
    %20 = tpu.matmul %19, %18, %cst {dimension_numbers = #tpu.dot_dimension_numbers<[1], [0], [0], [1], [0, 0, 1, 1], [], []>} : vector<16x16xbf16>, vector<16x384xbf16>, vector<16x384xf32> -> vector<16x384xf32>
    %21 = vector.extract_strided_slice %20 {offsets = [0, 0], sizes = [8, 384], strides = [1, 1]} : vector<16x384xf32> to vector<8x384xf32>
    %c0_9 = arith.constant 0 : index
    %c0_10 = arith.constant 0 : index
    %22 = vector.load %arg7[%c0_9, %c0_10] : memref<8x1xf32, #tpu.memory_space<vmem>>, vector<8x1xf32>
    %23 = vector.broadcast %22 : vector<8x1xf32> to vector<8x384xf32>
    %24 = arith.addf %21, %23 : vector<8x384xf32>
    %cst_11 = arith.constant 3.000000e+00 : f32
    %25 = vector.broadcast %cst_11 : f32 to vector<8x384xf32>
    %26 = arith.addf %24, %25 : vector<8x384xf32>
    %cst_12 = arith.constant 0.000000e+00 : f32
    %cst_13 = arith.constant 6.000000e+00 : f32
    %27 = vector.broadcast %cst_12 : f32 to vector<8x384xf32>
    %28 = arith.maximumf %27, %26 : vector<8x384xf32>
    %29 = vector.broadcast %cst_13 : f32 to vector<8x384xf32>
    %30 = arith.minimumf %29, %28 : vector<8x384xf32>
    %31 = arith.mulf %24, %30 : vector<8x384xf32>
    %cst_14 = arith.constant 0.166666672 : f32
    %32 = vector.broadcast %cst_14 : f32 to vector<8x384xf32>
    %33 = arith.mulf %31, %32 : vector<8x384xf32>
    %c0_15 = arith.constant 0 : index
    %c0_16 = arith.constant 0 : index
    %34 = vector.load %arg9[%c0_15, %c0_16] : memref<8x8xbf16, #tpu.memory_space<vmem>>, vector<8x8xbf16>
    %35 = arith.truncf %33 : vector<8x384xf32> to vector<8x384xbf16>
    %cst_17 = arith.constant dense<0.000000e+00> : vector<8x384xf32>
    %36 = tpu.matmul %34, %35, %cst_17 {dimension_numbers = #tpu.dot_dimension_numbers<[1], [0], [0], [1], [0, 0, 1, 1], [], []>} : vector<8x8xbf16>, vector<8x384xbf16>, vector<8x384xf32> -> vector<8x384xf32>
    %c0_18 = arith.constant 0 : index
    %c0_19 = arith.constant 0 : index
    %37 = vector.load %arg10[%c0_18, %c0_19] : memref<8x1xf32, #tpu.memory_space<vmem>>, vector<8x1xf32>
    %38 = vector.broadcast %37 : vector<8x1xf32> to vector<8x384xf32>
    %39 = arith.addf %36, %38 : vector<8x384xf32>
    %cst_20 = arith.constant 3.000000e+00 : f32
    %40 = vector.broadcast %cst_20 : f32 to vector<8x384xf32>
    %41 = arith.addf %39, %40 : vector<8x384xf32>
    %cst_21 = arith.constant 0.000000e+00 : f32
    %cst_22 = arith.constant 6.000000e+00 : f32
    %42 = vector.broadcast %cst_21 : f32 to vector<8x384xf32>
    %43 = arith.maximumf %42, %41 : vector<8x384xf32>
    %44 = vector.broadcast %cst_22 : f32 to vector<8x384xf32>
    %45 = arith.minimumf %44, %43 : vector<8x384xf32>
    %46 = arith.mulf %39, %45 : vector<8x384xf32>
    %cst_23 = arith.constant 0.166666672 : f32
    %47 = vector.broadcast %cst_23 : f32 to vector<8x384xf32>
    %48 = arith.mulf %46, %47 : vector<8x384xf32>
    %c0_24 = arith.constant 0 : index
    %c0_25 = arith.constant 0 : index
    %c0_26 = arith.constant 0 : index
    %49 = vector.load %arg3[%c0_24, %c0_25, %c0_26] : memref<1x1x384xf32, #tpu.memory_space<vmem>>, vector<1x1x384xf32>
    %50 = vector.shape_cast %49 : vector<1x1x384xf32> to vector<1x384xf32>
    %51 = vector.broadcast %50 : vector<1x384xf32> to vector<8x384xf32>
    %52 = arith.mulf %48, %51 : vector<8x384xf32>
    %c0_27 = arith.constant 0 : index
    %c0_28 = arith.constant 0 : index
    %53 = vector.load %arg4[%c0_27, %c0_28] : memref<1x384xf32, #tpu.memory_space<vmem>>, vector<1x384xf32>
    %54 = vector.broadcast %53 : vector<1x384xf32> to vector<8x384xf32>
    %55 = arith.mulf %52, %54 : vector<8x384xf32>
    %c0_29 = arith.constant 0 : index
    %c0_30 = arith.constant 0 : index
    %56 = vector.load %arg5[%c0_29, %c0_30] : memref<1x384xf32, #tpu.memory_space<vmem>>, vector<1x384xf32>
    %57 = vector.broadcast %56 : vector<1x384xf32> to vector<8x384xf32>
    %58 = arith.mulf %52, %57 : vector<8x384xf32>
    %59 = vector.extract_strided_slice %55 {offsets = [0, 111], sizes = [8, 128], strides = [1, 1]} : vector<8x384xf32> to vector<8x128xf32>
    %60 = vector.extract_strided_slice %52 {offsets = [0, 112], sizes = [8, 128], strides = [1, 1]} : vector<8x384xf32> to vector<8x128xf32>
    %61 = vector.extract_strided_slice %58 {offsets = [0, 113], sizes = [8, 128], strides = [1, 1]} : vector<8x384xf32> to vector<8x128xf32>
    %62 = vector.extract_strided_slice %55 {offsets = [0, 127], sizes = [8, 128], strides = [1, 1]} : vector<8x384xf32> to vector<8x128xf32>
    %63 = vector.extract_strided_slice %52 {offsets = [0, 128], sizes = [8, 128], strides = [1, 1]} : vector<8x384xf32> to vector<8x128xf32>
    %64 = vector.extract_strided_slice %58 {offsets = [0, 129], sizes = [8, 128], strides = [1, 1]} : vector<8x384xf32> to vector<8x128xf32>
    %65 = vector.extract_strided_slice %55 {offsets = [0, 143], sizes = [8, 128], strides = [1, 1]} : vector<8x384xf32> to vector<8x128xf32>
    %66 = vector.extract_strided_slice %52 {offsets = [0, 144], sizes = [8, 128], strides = [1, 1]} : vector<8x384xf32> to vector<8x128xf32>
    %67 = vector.extract_strided_slice %58 {offsets = [0, 145], sizes = [8, 128], strides = [1, 1]} : vector<8x384xf32> to vector<8x128xf32>
    %68 = tpu.concatenate %59, %60, %61, %62, %63, %64, %65, %66, %67 in 0 : vector<8x128xf32>, vector<8x128xf32>, vector<8x128xf32>, vector<8x128xf32>, vector<8x128xf32>, vector<8x128xf32>, vector<8x128xf32>, vector<8x128xf32>, vector<8x128xf32> -> vector<72x128xf32>
    %69 = arith.truncf %68 : vector<72x128xf32> to vector<72x128xbf16>
    %c0_31 = arith.constant 0 : index
    %c0_32 = arith.constant 0 : index
    %70 = vector.load %arg11[%c0_31, %c0_32] : memref<8x72xbf16, #tpu.memory_space<vmem>>, vector<8x72xbf16>
    %cst_33 = arith.constant dense<0.000000e+00> : vector<8x128xf32>
    %71 = tpu.matmul %70, %69, %cst_33 {dimension_numbers = #tpu.dot_dimension_numbers<[1], [0], [0], [1], [0, 0, 1, 1], [], []>} : vector<8x72xbf16>, vector<72x128xbf16>, vector<8x128xf32> -> vector<8x128xf32>
    %c0_34 = arith.constant 0 : index
    %c0_35 = arith.constant 0 : index
    %72 = vector.load %arg12[%c0_34, %c0_35] : memref<8x1xf32, #tpu.memory_space<vmem>>, vector<8x1xf32>
    %73 = vector.broadcast %72 : vector<8x1xf32> to vector<8x128xf32>
    %74 = arith.addf %71, %73 : vector<8x128xf32>
    %cst_36 = arith.constant 3.000000e+00 : f32
    %75 = vector.broadcast %cst_36 : f32 to vector<8x128xf32>
    %76 = arith.addf %74, %75 : vector<8x128xf32>
    %cst_37 = arith.constant 0.000000e+00 : f32
    %cst_38 = arith.constant 6.000000e+00 : f32
    %77 = vector.broadcast %cst_37 : f32 to vector<8x128xf32>
    %78 = arith.maximumf %77, %76 : vector<8x128xf32>
    %79 = vector.broadcast %cst_38 : f32 to vector<8x128xf32>
    %80 = arith.minimumf %79, %78 : vector<8x128xf32>
    %81 = arith.mulf %74, %80 : vector<8x128xf32>
    %cst_39 = arith.constant 0.166666672 : f32
    %82 = vector.broadcast %cst_39 : f32 to vector<8x128xf32>
    %83 = arith.mulf %81, %82 : vector<8x128xf32>
    %84 = vector.extract_strided_slice %33 {offsets = [0, 128], sizes = [8, 128], strides = [1, 1]} : vector<8x384xf32> to vector<8x128xf32>
    %85 = arith.addf %84, %83 : vector<8x128xf32>
    %c0_40 = arith.constant 0 : index
    %c0_41 = arith.constant 0 : index
    %86 = vector.load %arg13[%c0_40, %c0_41] : memref<8x8xbf16, #tpu.memory_space<vmem>>, vector<8x8xbf16>
    %87 = arith.truncf %85 : vector<8x128xf32> to vector<8x128xbf16>
    %cst_42 = arith.constant dense<0.000000e+00> : vector<8x128xf32>
    %88 = tpu.matmul %86, %87, %cst_42 {dimension_numbers = #tpu.dot_dimension_numbers<[1], [0], [0], [1], [0, 0, 1, 1], [], []>} : vector<8x8xbf16>, vector<8x128xbf16>, vector<8x128xf32> -> vector<8x128xf32>
    %c0_43 = arith.constant 0 : index
    %c0_44 = arith.constant 0 : index
    %89 = vector.load %arg14[%c0_43, %c0_44] : memref<8x1xf32, #tpu.memory_space<vmem>>, vector<8x1xf32>
    %90 = vector.broadcast %89 : vector<8x1xf32> to vector<8x128xf32>
    %91 = arith.addf %88, %90 : vector<8x128xf32>
    %cst_45 = arith.constant 0.000000e+00 : f32
    %92 = vector.broadcast %cst_45 : f32 to vector<8x128xf32>
    %93 = arith.cmpf ogt, %91, %92 : vector<8x128xf32>
    %cst_46 = arith.constant 1.000000e-01 : f32
    %94 = vector.broadcast %cst_46 : f32 to vector<8x128xf32>
    %95 = arith.mulf %94, %91 : vector<8x128xf32>
    %96 = arith.select %93, %91, %95 : vector<8x128xi1>, vector<8x128xf32>
    %97 = vector.extract_strided_slice %20 {offsets = [8, 128], sizes = [8, 128], strides = [1, 1]} : vector<16x384xf32> to vector<8x128xf32>
    %c0_47 = arith.constant 0 : index
    %c0_48 = arith.constant 0 : index
    %98 = vector.load %arg8[%c0_47, %c0_48] : memref<8x1xf32, #tpu.memory_space<vmem>>, vector<8x1xf32>
    %99 = vector.broadcast %98 : vector<8x1xf32> to vector<8x128xf32>
    %100 = arith.addf %97, %99 : vector<8x128xf32>
    %cst_49 = arith.constant 0.000000e+00 : f32
    %101 = vector.broadcast %cst_49 : f32 to vector<8x128xf32>
    %102 = arith.cmpf ogt, %100, %101 : vector<8x128xf32>
    %cst_50 = arith.constant 1.000000e-01 : f32
    %103 = vector.broadcast %cst_50 : f32 to vector<8x128xf32>
    %104 = arith.mulf %103, %100 : vector<8x128xf32>
    %105 = arith.select %102, %100, %104 : vector<8x128xi1>, vector<8x128xf32>
    %c0_51 = arith.constant 0 : index
    %c0_52 = arith.constant 0 : index
    %106 = vector.load %arg15[%c0_51, %c0_52] : memref<16x8xbf16, #tpu.memory_space<vmem>>, vector<16x8xbf16>
    %107 = arith.truncf %96 : vector<8x128xf32> to vector<8x128xbf16>
    %cst_53 = arith.constant dense<0.000000e+00> : vector<16x128xf32>
    %108 = tpu.matmul %106, %107, %cst_53 {dimension_numbers = #tpu.dot_dimension_numbers<[1], [0], [0], [1], [0, 0, 1, 1], [], []>} : vector<16x8xbf16>, vector<8x128xbf16>, vector<16x128xf32> -> vector<16x128xf32>
    %c0_54 = arith.constant 0 : index
    %c0_55 = arith.constant 0 : index
    %109 = vector.load %arg16[%c0_54, %c0_55] : memref<16x8xbf16, #tpu.memory_space<vmem>>, vector<16x8xbf16>
    %110 = arith.truncf %105 : vector<8x128xf32> to vector<8x128xbf16>
    %cst_56 = arith.constant dense<0.000000e+00> : vector<16x128xf32>
    %111 = tpu.matmul %109, %110, %cst_56 {dimension_numbers = #tpu.dot_dimension_numbers<[1], [0], [0], [1], [0, 0, 1, 1], [], []>} : vector<16x8xbf16>, vector<8x128xbf16>, vector<16x128xf32> -> vector<16x128xf32>
    %112 = arith.addf %108, %111 : vector<16x128xf32>
    %c0_57 = arith.constant 0 : index
    %c0_58 = arith.constant 0 : index
    %113 = vector.load %arg17[%c0_57, %c0_58] : memref<16x1xf32, #tpu.memory_space<vmem>>, vector<16x1xf32>
    %114 = vector.broadcast %113 : vector<16x1xf32> to vector<16x128xf32>
    %115 = arith.addf %112, %114 : vector<16x128xf32>
    %cst_59 = arith.constant 3.000000e+00 : f32
    %116 = vector.broadcast %cst_59 : f32 to vector<16x128xf32>
    %117 = arith.addf %115, %116 : vector<16x128xf32>
    %cst_60 = arith.constant 0.000000e+00 : f32
    %cst_61 = arith.constant 6.000000e+00 : f32
    %118 = vector.broadcast %cst_60 : f32 to vector<16x128xf32>
    %119 = arith.maximumf %118, %117 : vector<16x128xf32>
    %120 = vector.broadcast %cst_61 : f32 to vector<16x128xf32>
    %121 = arith.minimumf %120, %119 : vector<16x128xf32>
    %122 = arith.mulf %115, %121 : vector<16x128xf32>
    %cst_62 = arith.constant 0.166666672 : f32
    %123 = vector.broadcast %cst_62 : f32 to vector<16x128xf32>
    %124 = arith.mulf %122, %123 : vector<16x128xf32>
    %c0_63 = arith.constant 0 : index
    %c0_64 = arith.constant 0 : index
    %c0_65 = arith.constant 0 : index
    %125 = vector.load %arg18[%c0_63, %c0_64, %c0_65] : memref<1x16x128xf32, #tpu.memory_space<vmem>>, vector<1x16x128xf32>
    %126 = vector.shape_cast %125 : vector<1x16x128xf32> to vector<16x128xf32>
    %127 = vector.shape_cast %124 : vector<16x128xf32> to vector<1x16x128xf32>
    tpu.vector_store %arg18[%c0_63, %c0_64, %c0_65], %127 {strides = array<i32>} : memref<1x16x128xf32, #tpu.memory_space<vmem>>, vector<1x16x128xf32>,
    return
  }
  func.func @transform_1(%arg0: i32, %arg1: i32) -> (i32, i32, i32) {
    %c0_i32 = arith.constant 0 : i32
    %c0_i32_0 = arith.constant 0 : i32
    %c0_i32_1 = arith.constant 0 : i32
    return %arg1, %c0_i32, %c0_i32_0 : i32, i32, i32
  }
  func.func @transform_2(%arg0: i32, %arg1: i32) -> (i32, i32) {
    %c0_i32 = arith.constant 0 : i32
    %c0_i32_0 = arith.constant 0 : i32
    %c0_i32_1 = arith.constant 0 : i32
    return %c0_i32, %c0_i32_0 : i32, i32
  }
  func.func @transform_3(%arg0: i32, %arg1: i32) -> (i32, i32) {
    %c0_i32 = arith.constant 0 : i32
    %c0_i32_0 = arith.constant 0 : i32
    %c0_i32_1 = arith.constant 0 : i32
    return %c0_i32, %c0_i32_0 : i32, i32
  }
  func.func @transform_4(%arg0: i32, %arg1: i32) -> (i32, i32) {
    %c0_i32 = arith.constant 0 : i32
    %c0_i32_0 = arith.constant 0 : i32
    %c0_i32_1 = arith.constant 0 : i32
    return %c0_i32, %c0_i32_0 : i32, i32
  }
  func.func @transform_5(%arg0: i32, %arg1: i32) -> (i32, i32) {
    %c0_i32 = arith.constant 0 : i32
    %c0_i32_0 = arith.constant 0 : i32
    %c0_i32_1 = arith.constant 0 : i32
    return %c0_i32, %c0_i32_0 : i32, i32
  }
  func.func @transform_6(%arg0: i32, %arg1: i32) -> (i32, i32) {
    %c0_i32 = arith.constant 0 : i32
    %c0_i32_0 = arith.constant 0 : i32
    %c0_i32_1 = arith.constant 0 : i32
    return %c0_i32, %c0_i32_0 : i32, i32
  }
  func.func @transform_7(%arg0: i32, %arg1: i32) -> (i32, i32) {
    %c0_i32 = arith.constant 0 : i32
    %c0_i32_0 = arith.constant 0 : i32
    %c0_i32_1 = arith.constant 0 : i32
    return %c0_i32, %c0_i32_0 : i32, i32
  }
  func.func @transform_8(%arg0: i32, %arg1: i32) -> (i32, i32) {
    %c0_i32 = arith.constant 0 : i32
    %c0_i32_0 = arith.constant 0 : i32
    %c0_i32_1 = arith.constant 0 : i32
    return %c0_i32, %c0_i32_0 : i32, i32
  }
  func.func @transform_9(%arg0: i32, %arg1: i32) -> (i32, i32) {
    %c0_i32 = arith.constant 0 : i32
    %c0_i32_0 = arith.constant 0 : i32
    %c0_i32_1 = arith.constant 0 : i32
    return %c0_i32, %c0_i32_0 : i32, i32
  }
  func.func @transform_10(%arg0: i32, %arg1: i32) -> (i32, i32) {
    %c0_i32 = arith.constant 0 : i32
    %c0_i32_0 = arith.constant 0 : i32
    %c0_i32_1 = arith.constant 0 : i32
    return %c0_i32, %c0_i32_0 : i32, i32
  }
  func.func @transform_11(%arg0: i32, %arg1: i32) -> (i32, i32) {
    %c0_i32 = arith.constant 0 : i32
    %c0_i32_0 = arith.constant 0 : i32
    %c0_i32_1 = arith.constant 0 : i32
    return %c0_i32, %c0_i32_0 : i32, i32
  }
  func.func @transform_12(%arg0: i32, %arg1: i32) -> (i32, i32) {
    %c0_i32 = arith.constant 0 : i32
    %c0_i32_0 = arith.constant 0 : i32
    %c0_i32_1 = arith.constant 0 : i32
    return %c0_i32, %c0_i32_0 : i32, i32
  }
  func.func @transform_13(%arg0: i32, %arg1: i32) -> (i32, i32) {
    %c0_i32 = arith.constant 0 : i32
    %c0_i32_0 = arith.constant 0 : i32
    %c0_i32_1 = arith.constant 0 : i32
    return %c0_i32, %c0_i32_0 : i32, i32
  }
  func.func @transform_14(%arg0: i32, %arg1: i32) -> (i32, i32) {
    %c0_i32 = arith.constant 0 : i32
    %c0_i32_0 = arith.constant 0 : i32
    %c0_i32_1 = arith.constant 0 : i32
    return %c0_i32, %c0_i32_0 : i32, i32
  }
  func.func @transform_15(%arg0: i32, %arg1: i32) -> (i32, i32) {
    %c0_i32 = arith.constant 0 : i32
    %c0_i32_0 = arith.constant 0 : i32
    %c0_i32_1 = arith.constant 0 : i32
    return %c0_i32, %c0_i32_0 : i32, i32
  }
  func.func @transform_16(%arg0: i32, %arg1: i32) -> (i32, i32, i32) {
    %c0_i32 = arith.constant 0 : i32
    %c0_i32_0 = arith.constant 0 : i32
    return %arg0, %c0_i32, %arg1 : i32, i32, i32
  }
}

</mosaic_0001>

<llo_original>
// kernel: tpu_custom_call.1
$region0: #{tpu_custom_call.1}
  #allocation0 [shape = 'u32[]', space=smem, size = 0x4, offset = 0x4, fixed_abs, tag = 'smem constant byte address 0x4 - core index']
  #allocation1 [shape = 'u32[144,128]{1,0:T(1,128)}', space=vmem, size = 0x12000, scoped, tag = 'internal scratch']
  %s0 = inlined_call_operand.hbm [shape: f32[16,384], index: 0, kind: input, shape index: {}]
  %s1 = inlined_call_operand.hbm [shape: f32[16,384], index: 1, kind: output, shape index: {}]
  %s2 = sld [smem:[#allocation0]]
  $region18: #{tpu_custom_call.1} parent=0
    _
  %s4 = ssub.s32 1, %s2
  %s5 = scalar_select 0, %s4, %s2
  $region1: #{tpu_custom_call.1} parent=0
    #allocation2 [shape = 'u8[24576]{0}', space=vmem, size = 0x6000, scoped, tag = 'input window, operand 0, single buffered']
    #allocation3 [shape = 's32[1]{0}', space=sflag, size = 0x4, scoped, tag = 'scoped memory for tpu_custom_call.1']
    #allocation4 [shape = 's32[1]{0}', space=sflag, size = 0x4, scoped, tag = 'scoped memory for tpu_custom_call.1']
    #allocation5 [shape = 'u8[24576]{0}', space=vmem, size = 0x6000, scoped, tag = 'output window, operand 0, single buffered']
    %6 = vsyncpa [#allocation3], 0
    %7 = vsyncpa [#allocation4], 0
    // Predicated region
    $region2: #{tpu_custom_call.1} parent=1 // pred_check
      _
    $region3: #{tpu_custom_call.1} parent=1 // pred_check_branch
      %9 = sbr.rel (0) target = $region5
    $region4: #{tpu_custom_call.1} parent=1 // pred_region
      %s11 = ssub.s32 768, 768
      %12 = vsyncadd [#allocation3], %s11
      %s13 = sshll.u32 [#allocation2], 4
      %s14 = int_to_ptr.vmem [resolvable:$true] %s13
      %19 = dma.hbm_to_vmem [thread:$0]  %s0, 768, %s14, [#allocation3], 384, 384, 24
    $region5: #{tpu_custom_call.1} parent=1 // pred_fallthru
      _
    // Predicated region
    $region6: #{tpu_custom_call.1} parent=1 // pred_check
      _
    $region7: #{tpu_custom_call.1} parent=1 // pred_check_branch
      %21 = sbr.rel (0) target = $region9
    $region8: #{tpu_custom_call.1} parent=1 // pred_region
      %22 = dma.done [#allocation3], 768
    $region9: #{tpu_custom_call.1} parent=1 // pred_fallthru
      _
    %v23 = vld [vmem:[#allocation2] sm:$0xff]
    %v24 = vld [vmem:[#allocation2 + $0x8] sm:$0xff]
    %v25 = vld [vmem:[#allocation2 + $0x10] sm:$0xff]
    %v26 = vld [vmem:[#allocation2 + $0x18] sm:$0xff]
    %v27 = vld [vmem:[#allocation2 + $0x20] sm:$0xff]
    %v28 = vld [vmem:[#allocation2 + $0x28] sm:$0xff]
    %29 = vrot.lane.b32.xlu0 %v23, 17
    %v30 = vpop.permute.xlu0 %29
    %31 = vrot.lane.b32.xlu0 %v26, 17
    %v32 = vpop.permute.xlu0 %31
    %33 = vrot.lane.b32.xlu0 %v24, 17
    %v34 = vpop.permute.xlu0 %33
    %35 = vrot.lane.b32.xlu0 %v27, 17
    %v36 = vpop.permute.xlu0 %35
    %37 = vrot.lane.b32.xlu0 %v25, 17
    %v38 = vpop.permute.xlu0 %37
    %39 = vrot.lane.b32.xlu0 %v28, 17
    %v40 = vpop.permute.xlu0 %39
    %v41 = vlaneseq
    %v42 = vand.u32 %v41, 127
    %vm43 = vcmp.lt.s32.totalorder %v42, 17
    %v44 = vsel %vm43, %v34, %v38
    %v45 = vsel %vm43, %v36, %v40
    %v46 = vsel %vm43, %v30, %v34
    %v47 = vsel %vm43, %v32, %v36
    %v48 = vsel %vm43, %v38, %v30
    %v49 = vsel %vm43, %v40, %v32
    %50 = vst [vmem:[#allocation5] sm:$0xff] %v46
    %51 = vst [vmem:[#allocation5 + $0x8] sm:$0xff] %v44
    %52 = vst [vmem:[#allocation5 + $0x10] sm:$0xff] %v48
    %53 = vst [vmem:[#allocation5 + $0x18] sm:$0xff] %v47
    %54 = vst [vmem:[#allocation5 + $0x20] sm:$0xff] %v45
    %55 = vst [vmem:[#allocation5 + $0x28] sm:$0xff] %v49
    // Predicated region
    $region10: #{tpu_custom_call.1} parent=1 // pred_check
      _
    $region11: #{tpu_custom_call.1} parent=1 // pred_check_branch
      %57 = sbr.rel (0) target = $region13
    $region12: #{tpu_custom_call.1} parent=1 // pred_region
      %s59 = ssub.s32 768, 768
      %60 = vsyncadd [#allocation4], %s59
      %s61 = sshll.u32 [#allocation5], 4
      %s62 = int_to_ptr.vmem [resolvable:$true] %s61
      %67 = dma.vmem_to_hbm [thread:$0]  %s62, 768, %s1, [#allocation4], 384, 384, 24
    $region13: #{tpu_custom_call.1} parent=1 // pred_fallthru
      _
    // Predicated region
    $region14: #{tpu_custom_call.1} parent=1 // pred_check
      _
    $region15: #{tpu_custom_call.1} parent=1 // pred_check_branch
      %69 = sbr.rel (0) target = $region17
    $region16: #{tpu_custom_call.1} parent=1 // pred_region
      %70 = dma.done [#allocation4], 768
    $region17: #{tpu_custom_call.1} parent=1 // pred_fallthru
      _
    %71 = vsyncpa [#allocation3], 1
    %72 = vsyncpa [#allocation4], 1

// kernel: _forward_impl.1
$region0: #{_forward_impl.1}
  #allocation0 [shape = 'u32[]', space=smem, size = 0x4, offset = 0x4, fixed_abs, tag = 'smem constant byte address 0x4 - core index']
  #allocation1 [shape = 'u32[144,128]{1,0:T(1,128)}', space=vmem, size = 0x12000, scoped, tag = 'internal scratch']
  #allocation2 [shape = 'bf16[2,16,384]{2,1,0:T(16,128)(2,1)}', space=vmem, size = 0x6000, scoped, tag = 'scratch operand']
  #allocation3 [shape = 's32[2]{0}', space=sflag, size = 0x8, scoped, tag = 'scratch operand']
  #allocation5 [shape = 's32[]', space=sflag, size = 0x4, offset = 0, fixed_abs, tag = 'sflag constant byte address 0x0 - dummy sync flag']
  #allocation6 [shape = 's32[]', space=sflag, size = 0x4, offset = 0, fixed_abs, tag = 'sflag constant byte address 0x0 - dummy sync flag']
  %s0 = inlined_call_operand.vmem [shape: bf16[2,16,512], index: 0, kind: input, shape index: {}]
  %s1 = inlined_call_operand.vmem [shape: f32[2,1,384], index: 1, kind: input, shape index: {}]
  %s2 = inlined_call_operand.vmem [shape: f32[1,384], index: 2, kind: input, shape index: {}]
  %s3 = inlined_call_operand.vmem [shape: f32[1,384], index: 3, kind: input, shape index: {}]
  %s4 = inlined_call_operand.vmem [shape: bf16[16,16], index: 4, kind: input, shape index: {}]
  %s5 = inlined_call_operand.vmem [shape: f32[8,1], index: 5, kind: input, shape index: {}]
  %s6 = inlined_call_operand.vmem [shape: f32[8,1], index: 6, kind: input, shape index: {}]
  %s7 = inlined_call_operand.vmem [shape: bf16[8,8], index: 7, kind: input, shape index: {}]
  %s8 = inlined_call_operand.vmem [shape: f32[8,1], index: 8, kind: input, shape index: {}]
  %s9 = inlined_call_operand.vmem [shape: bf16[8,72], index: 9, kind: input, shape index: {}]
  %s10 = inlined_call_operand.vmem [shape: f32[8,1], index: 10, kind: input, shape index: {}]
  %s11 = inlined_call_operand.vmem [shape: bf16[8,8], index: 11, kind: input, shape index: {}]
  %s12 = inlined_call_operand.vmem [shape: f32[8,1], index: 12, kind: input, shape index: {}]
  %s13 = inlined_call_operand.vmem [shape: bf16[16,8], index: 13, kind: input, shape index: {}]
  %s14 = inlined_call_operand.vmem [shape: bf16[16,8], index: 14, kind: input, shape index: {}]
  %s15 = inlined_call_operand.vmem [shape: f32[16,1], index: 15, kind: input, shape index: {}]
  %s16 = inlined_call_operand.vmem [shape: f32[2,16,256], index: 16, kind: output, shape index: {}]
  %s17 = sld [smem:[#allocation0]]
  $region209: #{_forward_impl.1} parent=0
    _
  %s19 = ssub.s32 1, %s17
  %s20 = scalar_select 0, %s19, %s17
  $region1: #{_forward_impl.1} parent=0
    #allocation4 [shape = 'u8[16384]{0}', space=vmem, size = 0x4000, scoped, tag = 'output window, operand 0']
    loop: start=0, step=1, limit=6
    $region2: #{_forward_impl.1} parent=1 // loop_pre_header
      _
    $region3: #{_forward_impl.1} parent=1 // loop_header
      %s22 = sphi 0, %s26
      %p23 = scmp.ge.s32.totalorder %s22, 6
      %s29 = sphi 0, %s41
      %s30 = sphi 0, %s37
      %s31 = sphi 0, %s29
      %s32 = sphi 0, %s30
      %s33 = sphi 0, %s31
      %s34 = sphi 0, %s32
      %s44 = sphi 0, %s46
      %s47 = sphi 0, %s44
      %s48 = sphi 0, %s47
      %s64 = sphi 0, %s48
      %s68 = sphi 0, %s68
      %s70 = sphi 0, %s68
      %s71 = sphi 0, %s70
      %s85 = sphi 0, %s71
      %s89 = sphi 0, %s89
      %s91 = sphi 0, %s89
      %s92 = sphi 0, %s91
      %s106 = sphi 0, %s92
      %s110 = sphi 0, %s110
      %s112 = sphi 0, %s110
      %s113 = sphi 0, %s112
      %s127 = sphi 0, %s113
      %s131 = sphi 0, %s131
      %s133 = sphi 0, %s131
      %s134 = sphi 0, %s133
      %s148 = sphi 0, %s134
      %s152 = sphi 0, %s152
      %s154 = sphi 0, %s152
      %s155 = sphi 0, %s154
      %s169 = sphi 0, %s155
      %s173 = sphi 0, %s173
      %s175 = sphi 0, %s173
      %s176 = sphi 0, %s175
      %s190 = sphi 0, %s176
      %s194 = sphi 0, %s194
      %s196 = sphi 0, %s194
      %s197 = sphi 0, %s196
      %s211 = sphi 0, %s197
      %s215 = sphi 0, %s215
      %s217 = sphi 0, %s215
      %s218 = sphi 0, %s217
      %s232 = sphi 0, %s218
      %s236 = sphi 0, %s236
      %s238 = sphi 0, %s236
      %s239 = sphi 0, %s238
      %s253 = sphi 0, %s239
      %s257 = sphi 0, %s257
      %s259 = sphi 0, %s257
      %s260 = sphi 0, %s259
      %s274 = sphi 0, %s260
      %s278 = sphi 0, %s278
      %s280 = sphi 0, %s278
      %s281 = sphi 0, %s280
      %s295 = sphi 0, %s281
      %s299 = sphi 0, %s299
      %s301 = sphi 0, %s299
      %s302 = sphi 0, %s301
      %s316 = sphi 0, %s302
      %s320 = sphi 0, %s320
      %s322 = sphi 0, %s320
      %s323 = sphi 0, %s322
      %s337 = sphi 0, %s323
      %s341 = sphi 0, %s341
      %s343 = sphi 0, %s341
      %s344 = sphi 0, %s343
      %s358 = sphi 0, %s344
      %s366 = sphi 0, %s368
      %s369 = sphi 0, %s366
      %s370 = sphi 0, %s369
      %s386 = sphi 0, %s370
    $region4: #{_forward_impl.1} parent=1 // loop_header_branch
      %25 = sbr.rel (%p23) target = $region8
    $region5: #{_forward_impl.1} parent=1 // loop_body
      %s27 = ssub.s32 %s22, 1
      %s28 = ssub.s32 %s22, 2
      %s35 = sadd.s32 1, %s30
      %p36 = scmp.ge.s32.totalorder %s35, 2
      %s37 = scalar_select %p36, 0, %s35
      %s38 = sadd.s32 1, %s29
      %s39 = scalar_select %p36, %s38, %s29
      %p40 = scmp.ge.s32.totalorder %s39, 2
      %s41 = scalar_select %p40, 0, %s39
      %s42 = ssub.s32 %s30, %s37
      %p43 = scmp.eq.s32.totalorder %s42, 0
      %s45 = sadd.s32 %s44, 1
      %s46 = scalar_select %p43, %s44, %s45
      %p49 = pneg %p43
      %p50 = scmp.eq.s32.totalorder %s22, 3
      %p51 = por %p49, %p50
      %p52 = scmp.ne.s32.totalorder %s44, %s47
      %p53 = scmp.eq.s32.totalorder %s22, 0
      %p54 = por %p52, %p53
      %p55 = scmp.ne.s32.totalorder %s44, %s47
      %p56 = scmp.eq.s32.totalorder %s27, 3
      %p57 = por %p55, %p56
      %p58 = scmp.ne.s32.totalorder %s47, %s48
      %p59 = scmp.eq.s32.totalorder %s27, 0
      %p60 = por %p58, %p59
      %p61 = scmp.ne.s32.totalorder %s47, %s48
      %p62 = scmp.eq.s32.totalorder %s28, 3
      %p63 = por %p61, %p62
      %p65 = scmp.ne.s32.totalorder %s48, %s64
      %p66 = scmp.eq.s32.totalorder %s28, 0
      %p67 = por %p65, %p66
      %s69 = sadd.s32 %s68, 1
      %p72 = scmp.eq.s32.totalorder %s22, 3
      %p73 = scmp.ne.s32.totalorder %s68, %s70
      %p74 = scmp.eq.s32.totalorder %s22, 0
      %p75 = por %p73, %p74
      %p76 = scmp.ne.s32.totalorder %s68, %s70
      %p77 = scmp.eq.s32.totalorder %s27, 3
      %p78 = por %p76, %p77
      %p79 = scmp.ne.s32.totalorder %s70, %s71
      %p80 = scmp.eq.s32.totalorder %s27, 0
      %p81 = por %p79, %p80
      %p82 = scmp.ne.s32.totalorder %s70, %s71
      %p83 = scmp.eq.s32.totalorder %s28, 3
      %p84 = por %p82, %p83
      %p86 = scmp.ne.s32.totalorder %s71, %s85
      %p87 = scmp.eq.s32.totalorder %s28, 0
      %p88 = por %p86, %p87
      %s90 = sadd.s32 %s89, 1
      %p93 = scmp.eq.s32.totalorder %s22, 3
      %p94 = scmp.ne.s32.totalorder %s89, %s91
      %p95 = scmp.eq.s32.totalorder %s22, 0
      %p96 = por %p94, %p95
      %p97 = scmp.ne.s32.totalorder %s89, %s91
      %p98 = scmp.eq.s32.totalorder %s27, 3
      %p99 = por %p97, %p98
      %p100 = scmp.ne.s32.totalorder %s91, %s92
      %p101 = scmp.eq.s32.totalorder %s27, 0
      %p102 = por %p100, %p101
      %p103 = scmp.ne.s32.totalorder %s91, %s92
      %p104 = scmp.eq.s32.totalorder %s28, 3
      %p105 = por %p103, %p104
      %p107 = scmp.ne.s32.totalorder %s92, %s106
      %p108 = scmp.eq.s32.totalorder %s28, 0
      %p109 = por %p107, %p108
      %s111 = sadd.s32 %s110, 1
      %p114 = scmp.eq.s32.totalorder %s22, 3
      %p115 = scmp.ne.s32.totalorder %s110, %s112
      %p116 = scmp.eq.s32.totalorder %s22, 0
      %p117 = por %p115, %p116
      %p118 = scmp.ne.s32.totalorder %s110, %s112
      %p119 = scmp.eq.s32.totalorder %s27, 3
      %p120 = por %p118, %p119
      %p121 = scmp.ne.s32.totalorder %s112, %s113
      %p122 = scmp.eq.s32.totalorder %s27, 0
      %p123 = por %p121, %p122
      %p124 = scmp.ne.s32.totalorder %s112, %s113
      %p125 = scmp.eq.s32.totalorder %s28, 3
      %p126 = por %p124, %p125
      %p128 = scmp.ne.s32.totalorder %s113, %s127
      %p129 = scmp.eq.s32.totalorder %s28, 0
      %p130 = por %p128, %p129
      %s132 = sadd.s32 %s131, 1
      %p135 = scmp.eq.s32.totalorder %s22, 3
      %p136 = scmp.ne.s32.totalorder %s131, %s133
      %p137 = scmp.eq.s32.totalorder %s22, 0
      %p138 = por %p136, %p137
      %p139 = scmp.ne.s32.totalorder %s131, %s133
      %p140 = scmp.eq.s32.totalorder %s27, 3
      %p141 = por %p139, %p140
      %p142 = scmp.ne.s32.totalorder %s133, %s134
      %p143 = scmp.eq.s32.totalorder %s27, 0
      %p144 = por %p142, %p143
      %p145 = scmp.ne.s32.totalorder %s133, %s134
      %p146 = scmp.eq.s32.totalorder %s28, 3
      %p147 = por %p145, %p146
      %p149 = scmp.ne.s32.totalorder %s134, %s148
      %p150 = scmp.eq.s32.totalorder %s28, 0
      %p151 = por %p149, %p150
      %s153 = sadd.s32 %s152, 1
      %p156 = scmp.eq.s32.totalorder %s22, 3
      %p157 = scmp.ne.s32.totalorder %s152, %s154
      %p158 = scmp.eq.s32.totalorder %s22, 0
      %p159 = por %p157, %p158
      %p160 = scmp.ne.s32.totalorder %s152, %s154
      %p161 = scmp.eq.s32.totalorder %s27, 3
      %p162 = por %p160, %p161
      %p163 = scmp.ne.s32.totalorder %s154, %s155
      %p164 = scmp.eq.s32.totalorder %s27, 0
      %p165 = por %p163, %p164
      %p166 = scmp.ne.s32.totalorder %s154, %s155
      %p167 = scmp.eq.s32.totalorder %s28, 3
      %p168 = por %p166, %p167
      %p170 = scmp.ne.s32.totalorder %s155, %s169
      %p171 = scmp.eq.s32.totalorder %s28, 0
      %p172 = por %p170, %p171
      %s174 = sadd.s32 %s173, 1
      %p177 = scmp.eq.s32.totalorder %s22, 3
      %p178 = scmp.ne.s32.totalorder %s173, %s175
      %p179 = scmp.eq.s32.totalorder %s22, 0
      %p180 = por %p178, %p179
      %p181 = scmp.ne.s32.totalorder %s173, %s175
      %p182 = scmp.eq.s32.totalorder %s27, 3
      %p183 = por %p181, %p182
      %p184 = scmp.ne.s32.totalorder %s175, %s176
      %p185 = scmp.eq.s32.totalorder %s27, 0
      %p186 = por %p184, %p185
      %p187 = scmp.ne.s32.totalorder %s175, %s176
      %p188 = scmp.eq.s32.totalorder %s28, 3
      %p189 = por %p187, %p188
      %p191 = scmp.ne.s32.totalorder %s176, %s190
      %p192 = scmp.eq.s32.totalorder %s28, 0
      %p193 = por %p191, %p192
      %s195 = sadd.s32 %s194, 1
      %p198 = scmp.eq.s32.totalorder %s22, 3
      %p199 = scmp.ne.s32.totalorder %s194, %s196
      %p200 = scmp.eq.s32.totalorder %s22, 0
      %p201 = por %p199, %p200
      %p202 = scmp.ne.s32.totalorder %s194, %s196
      %p203 = scmp.eq.s32.totalorder %s27, 3
      %p204 = por %p202, %p203
      %p205 = scmp.ne.s32.totalorder %s196, %s197
      %p206 = scmp.eq.s32.totalorder %s27, 0
      %p207 = por %p205, %p206
      %p208 = scmp.ne.s32.totalorder %s196, %s197
      %p209 = scmp.eq.s32.totalorder %s28, 3
      %p210 = por %p208, %p209
      %p212 = scmp.ne.s32.totalorder %s197, %s211
      %p213 = scmp.eq.s32.totalorder %s28, 0
      %p214 = por %p212, %p213
      %s216 = sadd.s32 %s215, 1
      %p219 = scmp.eq.s32.totalorder %s22, 3
      %p220 = scmp.ne.s32.totalorder %s215, %s217
      %p221 = scmp.eq.s32.totalorder %s22, 0
      %p222 = por %p220, %p221
      %p223 = scmp.ne.s32.totalorder %s215, %s217
      %p224 = scmp.eq.s32.totalorder %s27, 3
      %p225 = por %p223, %p224
      %p226 = scmp.ne.s32.totalorder %s217, %s218
      %p227 = scmp.eq.s32.totalorder %s27, 0
      %p228 = por %p226, %p227
      %p229 = scmp.ne.s32.totalorder %s217, %s218
      %p230 = scmp.eq.s32.totalorder %s28, 3
      %p231 = por %p229, %p230
      %p233 = scmp.ne.s32.totalorder %s218, %s232
      %p234 = scmp.eq.s32.totalorder %s28, 0
      %p235 = por %p233, %p234
      %s237 = sadd.s32 %s236, 1
      %p240 = scmp.eq.s32.totalorder %s22, 3
      %p241 = scmp.ne.s32.totalorder %s236, %s238
      %p242 = scmp.eq.s32.totalorder %s22, 0
      %p243 = por %p241, %p242
      %p244 = scmp.ne.s32.totalorder %s236, %s238
      %p245 = scmp.eq.s32.totalorder %s27, 3
      %p246 = por %p244, %p245
      %p247 = scmp.ne.s32.totalorder %s238, %s239
      %p248 = scmp.eq.s32.totalorder %s27, 0
      %p249 = por %p247, %p248
      %p250 = scmp.ne.s32.totalorder %s238, %s239
      %p251 = scmp.eq.s32.totalorder %s28, 3
      %p252 = por %p250, %p251
      %p254 = scmp.ne.s32.totalorder %s239, %s253
      %p255 = scmp.eq.s32.totalorder %s28, 0
      %p256 = por %p254, %p255
      %s258 = sadd.s32 %s257, 1
      %p261 = scmp.eq.s32.totalorder %s22, 3
      %p262 = scmp.ne.s32.totalorder %s257, %s259
      %p263 = scmp.eq.s32.totalorder %s22, 0
      %p264 = por %p262, %p263
      %p265 = scmp.ne.s32.totalorder %s257, %s259
      %p266 = scmp.eq.s32.totalorder %s27, 3
      %p267 = por %p265, %p266
      %p268 = scmp.ne.s32.totalorder %s259, %s260
      %p269 = scmp.eq.s32.totalorder %s27, 0
      %p270 = por %p268, %p269
      %p271 = scmp.ne.s32.totalorder %s259, %s260
      %p272 = scmp.eq.s32.totalorder %s28, 3
      %p273 = por %p271, %p272
      %p275 = scmp.ne.s32.totalorder %s260, %s274
      %p276 = scmp.eq.s32.totalorder %s28, 0
      %p277 = por %p275, %p276
      %s279 = sadd.s32 %s278, 1
      %p282 = scmp.eq.s32.totalorder %s22, 3
      %p283 = scmp.ne.s32.totalorder %s278, %s280
      %p284 = scmp.eq.s32.totalorder %s22, 0
      %p285 = por %p283, %p284
      %p286 = scmp.ne.s32.totalorder %s278, %s280
      %p287 = scmp.eq.s32.totalorder %s27, 3
      %p288 = por %p286, %p287
      %p289 = scmp.ne.s32.totalorder %s280, %s281
      %p290 = scmp.eq.s32.totalorder %s27, 0
      %p291 = por %p289, %p290
      %p292 = scmp.ne.s32.totalorder %s280, %s281
      %p293 = scmp.eq.s32.totalorder %s28, 3
      %p294 = por %p292, %p293
      %p296 = scmp.ne.s32.totalorder %s281, %s295
      %p297 = scmp.eq.s32.totalorder %s28, 0
      %p298 = por %p296, %p297
      %s300 = sadd.s32 %s299, 1
      %p303 = scmp.eq.s32.totalorder %s22, 3
      %p304 = scmp.ne.s32.totalorder %s299, %s301
      %p305 = scmp.eq.s32.totalorder %s22, 0
      %p306 = por %p304, %p305
      %p307 = scmp.ne.s32.totalorder %s299, %s301
      %p308 = scmp.eq.s32.totalorder %s27, 3
      %p309 = por %p307, %p308
      %p310 = scmp.ne.s32.totalorder %s301, %s302
      %p311 = scmp.eq.s32.totalorder %s27, 0
      %p312 = por %p310, %p311
      %p313 = scmp.ne.s32.totalorder %s301, %s302
      %p314 = scmp.eq.s32.totalorder %s28, 3
      %p315 = por %p313, %p314
      %p317 = scmp.ne.s32.totalorder %s302, %s316
      %p318 = scmp.eq.s32.totalorder %s28, 0
      %p319 = por %p317, %p318
      %s321 = sadd.s32 %s320, 1
      %p324 = scmp.eq.s32.totalorder %s22, 3
      %p325 = scmp.ne.s32.totalorder %s320, %s322
      %p326 = scmp.eq.s32.totalorder %s22, 0
      %p327 = por %p325, %p326
      %p328 = scmp.ne.s32.totalorder %s320, %s322
      %p329 = scmp.eq.s32.totalorder %s27, 3
      %p330 = por %p328, %p329
      %p331 = scmp.ne.s32.totalorder %s322, %s323
      %p332 = scmp.eq.s32.totalorder %s27, 0
      %p333 = por %p331, %p332
      %p334 = scmp.ne.s32.totalorder %s322, %s323
      %p335 = scmp.eq.s32.totalorder %s28, 3
      %p336 = por %p334, %p335
      %p338 = scmp.ne.s32.totalorder %s323, %s337
      %p339 = scmp.eq.s32.totalorder %s28, 0
      %p340 = por %p338, %p339
      %s342 = sadd.s32 %s341, 1
      %p345 = scmp.eq.s32.totalorder %s22, 3
      %p346 = scmp.ne.s32.totalorder %s341, %s343
      %p347 = scmp.eq.s32.totalorder %s22, 0
      %p348 = por %p346, %p347
      %p349 = scmp.ne.s32.totalorder %s341, %s343
      %p350 = scmp.eq.s32.totalorder %s27, 3
      %p351 = por %p349, %p350
      %p352 = scmp.ne.s32.totalorder %s343, %s344
      %p353 = scmp.eq.s32.totalorder %s27, 0
      %p354 = por %p352, %p353
      %p355 = scmp.ne.s32.totalorder %s343, %s344
      %p356 = scmp.eq.s32.totalorder %s28, 3
      %p357 = por %p355, %p356
      %p359 = scmp.ne.s32.totalorder %s344, %s358
      %p360 = scmp.eq.s32.totalorder %s28, 0
      %p361 = por %p359, %p360
      %s362 = ssub.s32 %s29, %s41
      %s363 = ssub.s32 %s30, %s37
      %s364 = sor.u32 %s362, %s363
      %p365 = scmp.eq.s32.totalorder %s364, 0
      %s367 = sadd.s32 %s366, 1
      %s368 = scalar_select %p365, %s366, %s367
      %p371 = pneg %p365
      %p372 = scmp.eq.s32.totalorder %s22, 3
      %p373 = por %p371, %p372
      %p374 = scmp.ne.s32.totalorder %s366, %s369
      %p375 = scmp.eq.s32.totalorder %s22, 0
      %p376 = por %p374, %p375
      %p377 = scmp.ne.s32.totalorder %s366, %s369
      %p378 = scmp.eq.s32.totalorder %s27, 3
      %p379 = por %p377, %p378
      %p380 = scmp.ne.s32.totalorder %s369, %s370
      %p381 = scmp.eq.s32.totalorder %s27, 0
      %p382 = por %p380, %p381
      %p383 = scmp.ne.s32.totalorder %s369, %s370
      %p384 = scmp.eq.s32.totalorder %s28, 3
      %p385 = por %p383, %p384
      %p387 = scmp.ne.s32.totalorder %s370, %s386
      %p388 = scmp.eq.s32.totalorder %s28, 0
      %p389 = por %p387, %p388
      %p390 = scmp.le.s32.totalorder 1, %s22
      %p391 = scmp.lt.s32.totalorder %s22, 5
      %p392 = pnand %p390, %p391
      %p393 = pneg %p392
      // Predicated region
      $region9: #{_forward_impl.1} parent=5 // pred_check
        _
      $region10: #{_forward_impl.1} parent=5 // pred_check_branch
        %395 = sbr.rel (%p392) target = $region12
      $region11: #{_forward_impl.1} parent=5 // pred_region
        %s396 = ssub.s32 %s22, 1
        // Predicated region
        $region13: #{_forward_impl.1} parent=11 // pred_check
          %p397 = pneg %p81
        $region14: #{_forward_impl.1} parent=11 // pred_check_branch
          %399 = sbr.rel (%p397) target = $region16
        $region15: #{_forward_impl.1} parent=11 // pred_region
          _
        $region16: #{_forward_impl.1} parent=11 // pred_fallthru
          _
        // Predicated region
        $region17: #{_forward_impl.1} parent=11 // pred_check
          %p400 = pneg %p102
        $region18: #{_forward_impl.1} parent=11 // pred_check_branch
          %402 = sbr.rel (%p400) target = $region20
        $region19: #{_forward_impl.1} parent=11 // pred_region
          _
        $region20: #{_forward_impl.1} parent=11 // pred_fallthru
          _
        // Predicated region
        $region21: #{_forward_impl.1} parent=11 // pred_check
          %p403 = pneg %p123
        $region22: #{_forward_impl.1} parent=11 // pred_check_branch
          %405 = sbr.rel (%p403) target = $region24
        $region23: #{_forward_impl.1} parent=11 // pred_region
          _
        $region24: #{_forward_impl.1} parent=11 // pred_fallthru
          _
        // Predicated region
        $region25: #{_forward_impl.1} parent=11 // pred_check
          %p406 = pneg %p144
        $region26: #{_forward_impl.1} parent=11 // pred_check_branch
          %408 = sbr.rel (%p406) target = $region28
        $region27: #{_forward_impl.1} parent=11 // pred_region
          _
        $region28: #{_forward_impl.1} parent=11 // pred_fallthru
          _
        // Predicated region
        $region29: #{_forward_impl.1} parent=11 // pred_check
          %p409 = pneg %p165
        $region30: #{_forward_impl.1} parent=11 // pred_check_branch
          %411 = sbr.rel (%p409) target = $region32
        $region31: #{_forward_impl.1} parent=11 // pred_region
          _
        $region32: #{_forward_impl.1} parent=11 // pred_fallthru
          _
        // Predicated region
        $region33: #{_forward_impl.1} parent=11 // pred_check
          %p412 = pneg %p186
        $region34: #{_forward_impl.1} parent=11 // pred_check_branch
          %414 = sbr.rel (%p412) target = $region36
        $region35: #{_forward_impl.1} parent=11 // pred_region
          _
        $region36: #{_forward_impl.1} parent=11 // pred_fallthru
          _
        // Predicated region
        $region37: #{_forward_impl.1} parent=11 // pred_check
          %p415 = pneg %p207
        $region38: #{_forward_impl.1} parent=11 // pred_check_branch
          %417 = sbr.rel (%p415) target = $region40
        $region39: #{_forward_impl.1} parent=11 // pred_region
          _
        $region40: #{_forward_impl.1} parent=11 // pred_fallthru
          _
        // Predicated region
        $region41: #{_forward_impl.1} parent=11 // pred_check
          %p418 = pneg %p228
        $region42: #{_forward_impl.1} parent=11 // pred_check_branch
          %420 = sbr.rel (%p418) target = $region44
        $region43: #{_forward_impl.1} parent=11 // pred_region
          _
        $region44: #{_forward_impl.1} parent=11 // pred_fallthru
          _
        // Predicated region
        $region45: #{_forward_impl.1} parent=11 // pred_check
          %p421 = pneg %p249
        $region46: #{_forward_impl.1} parent=11 // pred_check_branch
          %423 = sbr.rel (%p421) target = $region48
        $region47: #{_forward_impl.1} parent=11 // pred_region
          _
        $region48: #{_forward_impl.1} parent=11 // pred_fallthru
          _
        // Predicated region
        $region49: #{_forward_impl.1} parent=11 // pred_check
          %p424 = pneg %p270
        $region50: #{_forward_impl.1} parent=11 // pred_check_branch
          %426 = sbr.rel (%p424) target = $region52
        $region51: #{_forward_impl.1} parent=11 // pred_region
          _
        $region52: #{_forward_impl.1} parent=11 // pred_fallthru
          _
        // Predicated region
        $region53: #{_forward_impl.1} parent=11 // pred_check
          %p427 = pneg %p291
        $region54: #{_forward_impl.1} parent=11 // pred_check_branch
          %429 = sbr.rel (%p427) target = $region56
        $region55: #{_forward_impl.1} parent=11 // pred_region
          _
        $region56: #{_forward_impl.1} parent=11 // pred_fallthru
          _
        // Predicated region
        $region57: #{_forward_impl.1} parent=11 // pred_check
          %p430 = pneg %p312
        $region58: #{_forward_impl.1} parent=11 // pred_check_branch
          %432 = sbr.rel (%p430) target = $region60
        $region59: #{_forward_impl.1} parent=11 // pred_region
          _
        $region60: #{_forward_impl.1} parent=11 // pred_fallthru
          _
        // Predicated region
        $region61: #{_forward_impl.1} parent=11 // pred_check
          %p433 = pneg %p333
        $region62: #{_forward_impl.1} parent=11 // pred_check_branch
          %435 = sbr.rel (%p433) target = $region64
        $region63: #{_forward_impl.1} parent=11 // pred_region
          _
        $region64: #{_forward_impl.1} parent=11 // pred_fallthru
          _
        // Predicated region
        $region65: #{_forward_impl.1} parent=11 // pred_check
          %p436 = pneg %p354
        $region66: #{_forward_impl.1} parent=11 // pred_check_branch
          %438 = sbr.rel (%p436) target = $region68
        $region67: #{_forward_impl.1} parent=11 // pred_region
          _
        $region68: #{_forward_impl.1} parent=11 // pred_fallthru
          _
      $region12: #{_forward_impl.1} parent=5 // pred_fallthru
        _
      %p439 = scmp.lt.s32.totalorder %s22, 4
      // Predicated region
      $region69: #{_forward_impl.1} parent=5 // pred_check
        %p440 = pneg %p439
      $region70: #{_forward_impl.1} parent=5 // pred_check_branch
        %442 = sbr.rel (%p440) target = $region72
      $region71: #{_forward_impl.1} parent=5 // pred_region
        // Predicated region
        $region73: #{_forward_impl.1} parent=71 // pred_check
          %p443 = pneg %p54
        $region74: #{_forward_impl.1} parent=71 // pred_check_branch
          %445 = sbr.rel (%p443) target = $region76
        $region75: #{_forward_impl.1} parent=71 // pred_region
          %p446 = scmp.lt.s32.totalorder %s30, 1
          %s447 = scalar_select %p446, %s30, 1
          %s448 = smul.addr %s447, 3
          %s449 = scalar_lea.vmem %s1, %s448
        $region76: #{_forward_impl.1} parent=71 // pred_fallthru
          _
      $region72: #{_forward_impl.1} parent=5 // pred_fallthru
        _
      %p450 = scmp.le.s32.totalorder 1, %s22
      %p451 = scmp.lt.s32.totalorder %s22, 5
      %p452 = pnand %p450, %p451
      %p453 = pneg %p452
      // Predicated region
      $region77: #{_forward_impl.1} parent=5 // pred_check
        _
      $region78: #{_forward_impl.1} parent=5 // pred_check_branch
        %455 = sbr.rel (%p452) target = $region80
      $region79: #{_forward_impl.1} parent=5 // pred_region
        %s456 = ssub.s32 %s22, 1
        %p457 = scmp.lt.s32.totalorder %s32, 1
        %s458 = scalar_select %p457, %s32, 1
        %s459 = smul.addr %s458, 3
        %s460 = scalar_lea.vmem %s1, %s459
        %p461 = pneg %p60
        %p462 = pneg %p57
        %p463 = pneg %p81
        %p464 = pneg %p78
        %p465 = pneg %p102
        %p466 = pneg %p99
        %p467 = pneg %p123
        %p468 = pneg %p120
        %p469 = pneg %p144
        %p470 = pneg %p141
        %p471 = pneg %p165
        %p472 = pneg %p162
        %p473 = pneg %p186
        %p474 = pneg %p183
        %p475 = pneg %p207
        %p476 = pneg %p204
        %p477 = pneg %p228
        %p478 = pneg %p225
        %p479 = pneg %p249
        %p480 = pneg %p246
        %p481 = pneg %p270
        %p482 = pneg %p267
        %p483 = pneg %p291
        %p484 = pneg %p288
        %p485 = pneg %p312
        %p486 = pneg %p309
        %p487 = pneg %p333
        %p488 = pneg %p330
        %p489 = pneg %p354
        %p490 = pneg %p351
        %p491 = pneg %p382
        %p492 = pneg %p379
        %s493 = sand.u32 %s369, 1
        %s494 = sand.u32 %s369, 1
        %s495 = smul.addr %s494, 16
        %s496 = scalar_lea.vmem [#allocation4], %s495
        %p497 = scmp.lt.s32.totalorder %s32, 1
        %s498 = scalar_select %p497, %s32, 1
        %s499 = smul.addr %s498, 3
        %s500 = scalar_lea.vmem %s1, %s499
        %p502 = scmp.lt.s32.totalorder %s32, 0
        %s503 = ssub.s32 0, %s32
        %s504 = scalar_select %p502, %s503, %s32
        %s505 = sand.u32 %s504, 1
        %s506 = ssub.s32 0, %s505
        %s507 = scalar_select %p502, %s506, %s505
        %p508 = scmp.eq.s32.totalorder %s32, 0
        // Predicated region
        $region81: #{_forward_impl.1} parent=79 // pred_check
          %p509 = pneg %p508
        $region82: #{_forward_impl.1} parent=79 // pred_check_branch
          %511 = sbr.rel (%p509) target = $region84
        $region83: #{_forward_impl.1} parent=79 // pred_region
          %s512 = smul.u32 %s32, 128
          %s513 = sshra.s32 %s512, 7
          %s514 = sand.u32 %s512, 127
          %s515 = smul.u32 %s31, 8
          %s516 = sadd.s32 %s513, %s515
          %s517 = smul.addr %s516, 4
          %s518 = scalar_lea.vmem %s0, %s517
          %s519 = smul.u32 %s507, 3
          %s520 = smul.addr %s519, 8
          %s521 = scalar_lea.vmem [#allocation2], %s520
          %s522 = scalar_lea.sflag [#allocation3], %s507
          %p524 = scmp.lt.u32.totalorder 4, 8
          %p525 = pneg %p524
          // Predicated region
          $region85: #{_forward_impl.1} parent=83 // pred_check
            _
          $region86: #{_forward_impl.1} parent=83 // pred_check_branch
            %527 = sbr.rel (%p524) target = $region88
          $region87: #{_forward_impl.1} parent=83 // pred_region
            %s552 = sand.u32 4, 7
            %p553 = scmp.eq.s32.totalorder %s552, 0
            %p554 = pneg %p553
            // Predicated region
            $region100: #{_forward_impl.1} parent=87 // pred_check
              _
            $region101: #{_forward_impl.1} parent=87 // pred_check_branch
              %556 = sbr.rel (%p553) target = $region103
            $region102: #{_forward_impl.1} parent=87 // pred_region
              %s557 = sand.u32 4, 7
              %s558 = ssub.s32 4, %s557
              %s559 = scalar_lea.vmem %s518, %s558
              %s560 = ssub.s32 4, %s557
              %s561 = scalar_lea.vmem %s521, %s560 [#allocation2]
              loop: start=0, step=1, limit=1
              $region104: #{_forward_impl.1} parent=102 // loop_pre_header
                _
              $region105: #{_forward_impl.1} parent=102 // loop_header
                %s563 = sphi 0, %s567
                %p564 = scmp.ge.s32.totalorder %s563, 1
                %s568 = sphi %s518, %s518
                %s569 = sphi %s521, %s521
              $region106: #{_forward_impl.1} parent=102 // loop_header_branch
                %566 = sbr.rel (%p564) target = $region110
              $region107: #{_forward_impl.1} parent=102 // loop_body
                _
              $region108: #{_forward_impl.1} parent=102 // loop_footer
                %s567 = sadd.s32 1, %s563
              $region109: #{_forward_impl.1} parent=102 // loop_footer_branch
                %562 = sbr.rel target = $region105
              $region110: #{_forward_impl.1} parent=102 // loop_exit
                _
              %s570 = sshllo.u32 0, %s557
              loop: start=0, step=1, limit=1
              $region111: #{_forward_impl.1} parent=102 // loop_pre_header
                _
              $region112: #{_forward_impl.1} parent=102 // loop_header
                %s572 = sphi 0, %s576
                %p573 = scmp.ge.s32.totalorder %s572, 1
                %s577 = sphi %s559, %s559
                %s578 = sphi %s561, %s561
              $region113: #{_forward_impl.1} parent=102 // loop_header_branch
                %575 = sbr.rel (%p573) target = $region117
              $region114: #{_forward_impl.1} parent=102 // loop_body
                %v579 = vld [vmem:[%s577] sm:%s570]
                %580 = vst [vmem:[%s578] sm:%s570] %v579
                %v581 = vld [vmem:[%s577 + $0x10] sm:%s570]
                %582 = vst [vmem:[%s578 + $0x4] sm:%s570] %v581
                %v583 = vld [vmem:[%s577 + $0x4] sm:%s570]
                %584 = vst [vmem:[%s578 + $0x8] sm:%s570] %v583
                %v585 = vld [vmem:[%s577 + $0x14] sm:%s570]
                %586 = vst [vmem:[%s578 + $0xc] sm:%s570] %v585
                %v587 = vld [vmem:[%s577 + $0x8] sm:%s570]
                %588 = vst [vmem:[%s578 + $0x10] sm:%s570] %v587
                %v589 = vld [vmem:[%s577 + $0x18] sm:%s570]
                %590 = vst [vmem:[%s578 + $0x14] sm:%s570] %v589
              $region115: #{_forward_impl.1} parent=102 // loop_footer
                %s576 = sadd.s32 1, %s572
              $region116: #{_forward_impl.1} parent=102 // loop_footer_branch
                %571 = sbr.rel target = $region112
              $region117: #{_forward_impl.1} parent=102 // loop_exit
                _
            $region103: #{_forward_impl.1} parent=87 // pred_fallthru
              _
          $region88: #{_forward_impl.1} parent=83 // pred_fallthru
            _
          // Predicated region
          $region89: #{_forward_impl.1} parent=83 // pred_check
            %p528 = pneg %p524
          $region90: #{_forward_impl.1} parent=83 // pred_check_branch
            %530 = sbr.rel (%p528) target = $region92
          $region91: #{_forward_impl.1} parent=83 // pred_region
            %s531 = sshllo.u32 0, 4
            loop: start=0, step=1, limit=1
            $region93: #{_forward_impl.1} parent=91 // loop_pre_header
              _
            $region94: #{_forward_impl.1} parent=91 // loop_header
              %s533 = sphi 0, %s537
              %p534 = scmp.ge.s32.totalorder %s533, 1
              %s538 = sphi %s518, %s518
              %s539 = sphi %s521, %s521
            $region95: #{_forward_impl.1} parent=91 // loop_header_branch
              %536 = sbr.rel (%p534) target = $region99
            $region96: #{_forward_impl.1} parent=91 // loop_body
              %v540 = vld [vmem:[%s538] sm:%s531]
              %541 = vst [vmem:[%s539] sm:%s531] %v540
              %v542 = vld [vmem:[%s538 + $0x10] sm:%s531]
              %543 = vst [vmem:[%s539 + $0x4] sm:%s531] %v542
              %v544 = vld [vmem:[%s538 + $0x4] sm:%s531]
              %545 = vst [vmem:[%s539 + $0x8] sm:%s531] %v544
              %v546 = vld [vmem:[%s538 + $0x14] sm:%s531]
              %547 = vst [vmem:[%s539 + $0xc] sm:%s531] %v546
              %v548 = vld [vmem:[%s538 + $0x8] sm:%s531]
              %549 = vst [vmem:[%s539 + $0x10] sm:%s531] %v548
              %v550 = vld [vmem:[%s538 + $0x18] sm:%s531]
              %551 = vst [vmem:[%s539 + $0x14] sm:%s531] %v550
            $region97: #{_forward_impl.1} parent=91 // loop_footer
              %s537 = sadd.s32 1, %s533
            $region98: #{_forward_impl.1} parent=91 // loop_footer_branch
              %532 = sbr.rel target = $region94
            $region99: #{_forward_impl.1} parent=91 // loop_exit
              _
          $region92: #{_forward_impl.1} parent=83 // pred_fallthru
            _
          // Predicated region
          $region118: #{_forward_impl.1} parent=83 // pred_check
            _
          $region119: #{_forward_impl.1} parent=83 // pred_check_branch
            %593 = sbr.rel (0) target = $region121
          $region120: #{_forward_impl.1} parent=83 // pred_region
            %594 = vsyncadd %s522, 384
          $region121: #{_forward_impl.1} parent=83 // pred_fallthru
            _
        $region84: #{_forward_impl.1} parent=79 // pred_fallthru
          _
        %s595 = sadd.s32 %s32, 1
        %p596 = scmp.lt.s32.totalorder %s595, 2
        // Predicated region
        $region122: #{_forward_impl.1} parent=79 // pred_check
          %p597 = pneg %p596
        $region123: #{_forward_impl.1} parent=79 // pred_check_branch
          %599 = sbr.rel (%p597) target = $region125
        $region124: #{_forward_impl.1} parent=79 // pred_region
          %s600 = ssub.s32 1, %s507
          %s601 = smul.u32 %s595, 128
          %s602 = sshra.s32 %s601, 7
          %s603 = sand.u32 %s601, 127
          %s604 = smul.u32 %s31, 8
          %s605 = sadd.s32 %s602, %s604
          %s606 = smul.addr %s605, 4
          %s607 = scalar_lea.vmem %s0, %s606
          %s608 = smul.u32 %s600, 3
          %s609 = smul.addr %s608, 8
          %s610 = scalar_lea.vmem [#allocation2], %s609
          %s611 = scalar_lea.sflag [#allocation3], %s600
          %p613 = scmp.lt.u32.totalorder 4, 8
          %p614 = pneg %p613
          // Predicated region
          $region126: #{_forward_impl.1} parent=124 // pred_check
            _
          $region127: #{_forward_impl.1} parent=124 // pred_check_branch
            %616 = sbr.rel (%p613) target = $region129
          $region128: #{_forward_impl.1} parent=124 // pred_region
            %s641 = sand.u32 4, 7
            %p642 = scmp.eq.s32.totalorder %s641, 0
            %p643 = pneg %p642
            // Predicated region
            $region141: #{_forward_impl.1} parent=128 // pred_check
              _
            $region142: #{_forward_impl.1} parent=128 // pred_check_branch
              %645 = sbr.rel (%p642) target = $region144
            $region143: #{_forward_impl.1} parent=128 // pred_region
              %s646 = sand.u32 4, 7
              %s647 = ssub.s32 4, %s646
              %s648 = scalar_lea.vmem %s607, %s647
              %s649 = ssub.s32 4, %s646
              %s650 = scalar_lea.vmem %s610, %s649 [#allocation2]
              loop: start=0, step=1, limit=1
              $region145: #{_forward_impl.1} parent=143 // loop_pre_header
                _
              $region146: #{_forward_impl.1} parent=143 // loop_header
                %s652 = sphi 0, %s656
                %p653 = scmp.ge.s32.totalorder %s652, 1
                %s657 = sphi %s607, %s607
                %s658 = sphi %s610, %s610
              $region147: #{_forward_impl.1} parent=143 // loop_header_branch
                %655 = sbr.rel (%p653) target = $region151
              $region148: #{_forward_impl.1} parent=143 // loop_body
                _
              $region149: #{_forward_impl.1} parent=143 // loop_footer
                %s656 = sadd.s32 1, %s652
              $region150: #{_forward_impl.1} parent=143 // loop_footer_branch
                %651 = sbr.rel target = $region146
              $region151: #{_forward_impl.1} parent=143 // loop_exit
                _
              %s659 = sshllo.u32 0, %s646
              loop: start=0, step=1, limit=1
              $region152: #{_forward_impl.1} parent=143 // loop_pre_header
                _
              $region153: #{_forward_impl.1} parent=143 // loop_header
                %s661 = sphi 0, %s665
                %p662 = scmp.ge.s32.totalorder %s661, 1
                %s666 = sphi %s648, %s648
                %s667 = sphi %s650, %s650
              $region154: #{_forward_impl.1} parent=143 // loop_header_branch
                %664 = sbr.rel (%p662) target = $region158
              $region155: #{_forward_impl.1} parent=143 // loop_body
                %v668 = vld [vmem:[%s666] sm:%s659]
                %669 = vst [vmem:[%s667] sm:%s659] %v668
                %v670 = vld [vmem:[%s666 + $0x10] sm:%s659]
                %671 = vst [vmem:[%s667 + $0x4] sm:%s659] %v670
                %v672 = vld [vmem:[%s666 + $0x4] sm:%s659]
                %673 = vst [vmem:[%s667 + $0x8] sm:%s659] %v672
                %v674 = vld [vmem:[%s666 + $0x14] sm:%s659]
                %675 = vst [vmem:[%s667 + $0xc] sm:%s659] %v674
                %v676 = vld [vmem:[%s666 + $0x8] sm:%s659]
                %677 = vst [vmem:[%s667 + $0x10] sm:%s659] %v676
                %v678 = vld [vmem:[%s666 + $0x18] sm:%s659]
                %679 = vst [vmem:[%s667 + $0x14] sm:%s659] %v678
              $region156: #{_forward_impl.1} parent=143 // loop_footer
                %s665 = sadd.s32 1, %s661
              $region157: #{_forward_impl.1} parent=143 // loop_footer_branch
                %660 = sbr.rel target = $region153
              $region158: #{_forward_impl.1} parent=143 // loop_exit
                _
            $region144: #{_forward_impl.1} parent=128 // pred_fallthru
              _
          $region129: #{_forward_impl.1} parent=124 // pred_fallthru
            _
          // Predicated region
          $region130: #{_forward_impl.1} parent=124 // pred_check
            %p617 = pneg %p613
          $region131: #{_forward_impl.1} parent=124 // pred_check_branch
            %619 = sbr.rel (%p617) target = $region133
          $region132: #{_forward_impl.1} parent=124 // pred_region
            %s620 = sshllo.u32 0, 4
            loop: start=0, step=1, limit=1
            $region134: #{_forward_impl.1} parent=132 // loop_pre_header
              _
            $region135: #{_forward_impl.1} parent=132 // loop_header
              %s622 = sphi 0, %s626
              %p623 = scmp.ge.s32.totalorder %s622, 1
              %s627 = sphi %s607, %s607
              %s628 = sphi %s610, %s610
            $region136: #{_forward_impl.1} parent=132 // loop_header_branch
              %625 = sbr.rel (%p623) target = $region140
            $region137: #{_forward_impl.1} parent=132 // loop_body
              %v629 = vld [vmem:[%s627] sm:%s620]
              %630 = vst [vmem:[%s628] sm:%s620] %v629
              %v631 = vld [vmem:[%s627 + $0x10] sm:%s620]
              %632 = vst [vmem:[%s628 + $0x4] sm:%s620] %v631
              %v633 = vld [vmem:[%s627 + $0x4] sm:%s620]
              %634 = vst [vmem:[%s628 + $0x8] sm:%s620] %v633
              %v635 = vld [vmem:[%s627 + $0x14] sm:%s620]
              %636 = vst [vmem:[%s628 + $0xc] sm:%s620] %v635
              %v637 = vld [vmem:[%s627 + $0x8] sm:%s620]
              %638 = vst [vmem:[%s628 + $0x10] sm:%s620] %v637
              %v639 = vld [vmem:[%s627 + $0x18] sm:%s620]
              %640 = vst [vmem:[%s628 + $0x14] sm:%s620] %v639
            $region138: #{_forward_impl.1} parent=132 // loop_footer
              %s626 = sadd.s32 1, %s622
            $region139: #{_forward_impl.1} parent=132 // loop_footer_branch
              %621 = sbr.rel target = $region135
            $region140: #{_forward_impl.1} parent=132 // loop_exit
              _
          $region133: #{_forward_impl.1} parent=124 // pred_fallthru
            _
          // Predicated region
          $region159: #{_forward_impl.1} parent=124 // pred_check
            _
          $region160: #{_forward_impl.1} parent=124 // pred_check_branch
            %682 = sbr.rel (0) target = $region162
          $region161: #{_forward_impl.1} parent=124 // pred_region
            %683 = vsyncadd %s611, 384
          $region162: #{_forward_impl.1} parent=124 // pred_fallthru
            _
        $region125: #{_forward_impl.1} parent=79 // pred_fallthru
          _
        %s684 = smul.u32 %s32, 128
        %s685 = smul.u32 %s507, 3
        %s686 = smul.addr %s685, 8
        %s687 = scalar_lea.vmem [#allocation2], %s686
        %s688 = scalar_lea.sflag [#allocation3], %s507
        %s689 = smul.u32 4, 2
        %s690 = smul.u32 %s689, 3
        %s691 = sshll.u32 %s690, 4
        %692 = dma.done %s688, %s691
        %v693 = vld [vmem:[%s687] sm:$0xff]
        %v694 = vld [vmem:[%s687 + $0x8] sm:$0xff]
        %v695 = vld [vmem:[%s687 + $0x10] sm:$0xff]
        %v696 = vld [vmem:[%s4] sm:$0xf]
        %v697 = vld [vmem:[%s4 + $0x4] sm:$0xf]
        %v700 = vunpack.c.l.b16 %v696
        %v701 = vunpack.c.l.b16 %v697
        %v702 = vpack.c.b16 %v701, %v700
        %vm703 = vcmask 130048
        %v705 = vsel %vm703, %v702, 0
        %707 = vmatprep.subr.bf16.mxu0 %v694
        %708 = vmatpush1.bf16.msra.mxu0 %v693
        %709 = vmatprep.subr.bf16.mxu0 0
        %710 = vmatpush1.bf16.msra.mxu0 0
        %711 = vmatprep.subr.bf16.mxu0 0
        %712 = vmatpush1.bf16.msra.mxu0 0
        %713 = vmatprep.subr.bf16.mxu0 0
        %714 = vmatpush1.bf16.msra.mxu0 0
        %715 = vmatprep.subr.bf16.mxu0 0
        %716 = vmatpush1.bf16.msra.mxu0 0
        %717 = vmatprep.subr.bf16.mxu0 0
        %718 = vmatpush1.bf16.msra.mxu0 0
        %719 = vmatprep.subr.bf16.mxu0 0
        %720 = vmatpush1.bf16.msra.mxu0 0
        %721 = vmatprep.subr.bf16.mxu0 0
        %722 = vmatpush1.bf16.msra.mxu0 0
        %723 = vmatprep.subr.bf16.mxu0 0
        %724 = vmatpush1.bf16.msra.mxu0 0
        %725 = vmatprep.subr.bf16.mxu0 0
        %726 = vmatpush1.bf16.msra.mxu0 0
        %727 = vmatprep.subr.bf16.mxu0 0
        %728 = vmatpush1.bf16.msra.mxu0 0
        %729 = vmatprep.subr.bf16.mxu0 0
        %730 = vmatpush1.bf16.msra.mxu0 0
        %731 = vmatprep.subr.bf16.mxu0 0
        %732 = vmatpush1.bf16.msra.mxu0 0
        %733 = vmatprep.subr.bf16.mxu0 0
        %734 = vmatpush1.bf16.msra.mxu0 0
        %735 = vmatprep.subr.bf16.mxu0 0
        %736 = vmatpush1.bf16.msra.mxu0 0
        %737 = vmatprep.subr.bf16.mxu0 0
        %738 = vmatpush1.bf16.msra.mxu0 0
        %739 = vmatprep.mubr.bf16.mxu0 0
        %740 = vmatmul.mubr.bf16.gmra.mrb[0].mxu0 %v705
        %v741 = vpop.f32.mrb[0].mxu0
        %v742 = vadd.f32 0.0, %v741
        %v743 = vpop.f32.mrb[0].mxu0
        %v744 = vadd.f32 0.0, %v743
        %v745 = vpop.f32.mrb[0].mxu0
        %v746 = vpop.f32.mrb[0].mxu0
        %v747 = vadd.f32 0.0, %v746
        %748 = vdwg.mxu0
        %749 = vmatprep.subr.bf16.mxu0 0
        %750 = vmatpush1.bf16.msra.mxu0 %v695
        %751 = vmatprep.subr.bf16.mxu0 0
        %752 = vmatpush1.bf16.msra.mxu0 0
        %753 = vmatprep.subr.bf16.mxu0 0
        %754 = vmatpush1.bf16.msra.mxu0 0
        %755 = vmatprep.subr.bf16.mxu0 0
        %756 = vmatpush1.bf16.msra.mxu0 0
        %757 = vmatprep.subr.bf16.mxu0 0
        %758 = vmatpush1.bf16.msra.mxu0 0
        %759 = vmatprep.subr.bf16.mxu0 0
        %760 = vmatpush1.bf16.msra.mxu0 0
        %761 = vmatprep.subr.bf16.mxu0 0
        %762 = vmatpush1.bf16.msra.mxu0 0
        %763 = vmatprep.subr.bf16.mxu0 0
        %764 = vmatpush1.bf16.msra.mxu0 0
        %765 = vmatprep.subr.bf16.mxu0 0
        %766 = vmatpush1.bf16.msra.mxu0 0
        %767 = vmatprep.subr.bf16.mxu0 0
        %768 = vmatpush1.bf16.msra.mxu0 0
        %769 = vmatprep.subr.bf16.mxu0 0
        %770 = vmatpush1.bf16.msra.mxu0 0
        %771 = vmatprep.subr.bf16.mxu0 0
        %772 = vmatpush1.bf16.msra.mxu0 0
        %773 = vmatprep.subr.bf16.mxu0 0
        %774 = vmatpush1.bf16.msra.mxu0 0
        %775 = vmatprep.subr.bf16.mxu0 0
        %776 = vmatpush1.bf16.msra.mxu0 0
        %777 = vmatprep.subr.bf16.mxu0 0
        %778 = vmatpush1.bf16.msra.mxu0 0
        %779 = vmatprep.subr.bf16.mxu0 0
        %780 = vmatpush1.bf16.msra.mxu0 0
        %781 = vmatprep.mubr.bf16.mxu0 0
        %782 = vmatmul.mubr.bf16.gmra.mrb[0].mxu0 %v705
        %v783 = vpop.f32.mrb[0].mxu0
        %v784 = vadd.f32 0.0, %v783
        %v785 = vpop.f32.mrb[0].mxu0
        %v786 = vpop.f32.mrb[0].mxu0
        %v787 = vpop.f32.mrb[0].mxu0
        %788 = vdwg.mxu0
        %v789 = vld [vmem:[%s5] sm:$0xff]
        %791 = vset.pattern.permute.xlu0 0
        %792 = vperm.xlu0 %791, %v789
        %v793 = vpop.permute.xlu0 %792
        %v795 = vadd.f32 %v742, %v793
        %v796 = vadd.f32 %v744, %v793
        %v797 = vadd.f32 %v784, %v793
        %v798 = vadd.f32 %v795, 3.0
        %v799 = vadd.f32 %v796, 3.0
        %v800 = vadd.f32 %v797, 3.0
        %v801 = vmax.f32 %v798, 0.0
        %v802 = vmax.f32 %v799, 0.0
        %v803 = vmax.f32 %v800, 0.0
        %v804 = vmin.f32 %v801, 6.0
        %v805 = vmin.f32 %v802, 6.0
        %v806 = vmin.f32 %v803, 6.0
        %v807 = vmul.f32 %v795, %v804
        %v808 = vmul.f32 %v796, %v805
        %v809 = vmul.f32 %v797, %v806
        %v810 = vmul.f32 %v807, 0.16666667
        %v811 = vmul.f32 %v808, 0.16666667
        %v812 = vmul.f32 %v809, 0.16666667
        %v813 = vld [vmem:[%s7] sm:$0xf]
        %v814 = vpack.c.bf16 %v810, %v810
        %v815 = vpack.c.bf16 %v811, %v811
        %v816 = vpack.c.bf16 %v812, %v812
        %v817 = vld [vmem:[%s8] sm:$0xff]
        %819 = vset.pattern.permute.xlu0 0
        %820 = vperm.xlu0 %819, %v817
        %v821 = vpop.permute.xlu0 %820
        %vm823 = vcmask 64512
        %v825 = vsel %vm823, %v813, 0
        %vm827 = vcmask 1043456
        %v829 = vsel %vm827, %v814, 0
        %v832 = vsel %vm827, %v815, 0
        %v835 = vsel %vm827, %v816, 0
        %837 = vmatprep.subr.bf16.mxu0 %v832
        %838 = vmatpush1.bf16.msra.mxu0 %v829
        %839 = vmatprep.subr.bf16.mxu0 0
        %840 = vmatpush1.bf16.msra.mxu0 0
        %841 = vmatprep.subr.bf16.mxu0 0
        %842 = vmatpush1.bf16.msra.mxu0 0
        %843 = vmatprep.subr.bf16.mxu0 0
        %844 = vmatpush1.bf16.msra.mxu0 0
        %845 = vmatprep.subr.bf16.mxu0 0
        %846 = vmatpush1.bf16.msra.mxu0 0
        %847 = vmatprep.subr.bf16.mxu0 0
        %848 = vmatpush1.bf16.msra.mxu0 0
        %849 = vmatprep.subr.bf16.mxu0 0
        %850 = vmatpush1.bf16.msra.mxu0 0
        %851 = vmatprep.subr.bf16.mxu0 0
        %852 = vmatpush1.bf16.msra.mxu0 0
        %853 = vmatprep.subr.bf16.mxu0 0
        %854 = vmatpush1.bf16.msra.mxu0 0
        %855 = vmatprep.subr.bf16.mxu0 0
        %856 = vmatpush1.bf16.msra.mxu0 0
        %857 = vmatprep.subr.bf16.mxu0 0
        %858 = vmatpush1.bf16.msra.mxu0 0
        %859 = vmatprep.subr.bf16.mxu0 0
        %860 = vmatpush1.bf16.msra.mxu0 0
        %861 = vmatprep.subr.bf16.mxu0 0
        %862 = vmatpush1.bf16.msra.mxu0 0
        %863 = vmatprep.subr.bf16.mxu0 0
        %864 = vmatpush1.bf16.msra.mxu0 0
        %865 = vmatprep.subr.bf16.mxu0 0
        %866 = vmatpush1.bf16.msra.mxu0 0
        %867 = vmatprep.subr.bf16.mxu0 0
        %868 = vmatpush1.bf16.msra.mxu0 0
        %869 = vmatprep.mubr.bf16.mxu0 0
        %870 = vmatmul.mubr.bf16.gmra.mrb[0].mxu0 %v825
        %v871 = vpop.f32.mrb[0].mxu0
        %v872 = vadd.f32 %v821, %v871
        %v873 = vpop.f32.mrb[0].mxu0
        %v874 = vadd.f32 %v821, %v873
        %v875 = vpop.f32.mrb[0].mxu0
        %v876 = vpop.f32.mrb[0].mxu0
        %877 = vdwg.mxu0
        %878 = vmatprep.subr.bf16.mxu0 0
        %879 = vmatpush1.bf16.msra.mxu0 %v835
        %880 = vmatprep.subr.bf16.mxu0 0
        %881 = vmatpush1.bf16.msra.mxu0 0
        %882 = vmatprep.subr.bf16.mxu0 0
        %883 = vmatpush1.bf16.msra.mxu0 0
        %884 = vmatprep.subr.bf16.mxu0 0
        %885 = vmatpush1.bf16.msra.mxu0 0
        %886 = vmatprep.subr.bf16.mxu0 0
        %887 = vmatpush1.bf16.msra.mxu0 0
        %888 = vmatprep.subr.bf16.mxu0 0
        %889 = vmatpush1.bf16.msra.mxu0 0
        %890 = vmatprep.subr.bf16.mxu0 0
        %891 = vmatpush1.bf16.msra.mxu0 0
        %892 = vmatprep.subr.bf16.mxu0 0
        %893 = vmatpush1.bf16.msra.mxu0 0
        %894 = vmatprep.subr.bf16.mxu0 0
        %895 = vmatpush1.bf16.msra.mxu0 0
        %896 = vmatprep.subr.bf16.mxu0 0
        %897 = vmatpush1.bf16.msra.mxu0 0
        %898 = vmatprep.subr.bf16.mxu0 0
        %899 = vmatpush1.bf16.msra.mxu0 0
        %900 = vmatprep.subr.bf16.mxu0 0
        %901 = vmatpush1.bf16.msra.mxu0 0
        %902 = vmatprep.subr.bf16.mxu0 0
        %903 = vmatpush1.bf16.msra.mxu0 0
        %904 = vmatprep.subr.bf16.mxu0 0
        %905 = vmatpush1.bf16.msra.mxu0 0
        %906 = vmatprep.subr.bf16.mxu0 0
        %907 = vmatpush1.bf16.msra.mxu0 0
        %908 = vmatprep.subr.bf16.mxu0 0
        %909 = vmatpush1.bf16.msra.mxu0 0
        %910 = vmatprep.mubr.bf16.mxu0 0
        %911 = vmatmul.mubr.bf16.gmra.mrb[0].mxu0 %v825
        %v912 = vpop.f32.mrb[0].mxu0
        %v913 = vadd.f32 %v821, %v912
        %v914 = vpop.f32.mrb[0].mxu0
        %v915 = vpop.f32.mrb[0].mxu0
        %v916 = vpop.f32.mrb[0].mxu0
        %917 = vdwg.mxu0
        %v918 = vadd.f32 %v872, 3.0
        %v919 = vadd.f32 %v874, 3.0
        %v920 = vadd.f32 %v913, 3.0
        %v921 = vmax.f32 %v918, 0.0
        %v922 = vmax.f32 %v919, 0.0
        %v923 = vmax.f32 %v920, 0.0
        %v924 = vmin.f32 %v921, 6.0
        %v925 = vmin.f32 %v922, 6.0
        %v926 = vmin.f32 %v923, 6.0
        %v927 = vmul.f32 %v872, %v924
        %v928 = vmul.f32 %v874, %v925
        %v929 = vmul.f32 %v913, %v926
        %v930 = vmul.f32 %v927, 0.16666667
        %v931 = vmul.f32 %v928, 0.16666667
        %v932 = vmul.f32 %v929, 0.16666667
        %v933 = vld [vmem:[%s500] sm:$0x7]
        %v935 = vlaneseq
        %v936 = vshrl.u32 %v935, 7
        %v937 = vsub.s32 0, %v936
        %v938 = vrot.slane %v933, %v937
        %v939 = vlaneseq
        %v940 = vshrl.u32 %v939, 7
        %v941 = vsub.s32 1, %v940
        %v942 = vrot.slane %v933, %v941
        %v943 = vlaneseq
        %v944 = vshrl.u32 %v943, 7
        %v945 = vsub.s32 2, %v944
        %v946 = vrot.slane %v933, %v945
        %v950 = vmul.f32 %v930, %v938
        %v951 = vmul.f32 %v931, %v942
        %v952 = vmul.f32 %v932, %v946
        %v953 = vld [vmem:[%s2] sm:$0x7]
        %v955 = vlaneseq
        %v956 = vshrl.u32 %v955, 7
        %v957 = vsub.s32 0, %v956
        %v958 = vrot.slane %v953, %v957
        %v959 = vlaneseq
        %v960 = vshrl.u32 %v959, 7
        %v961 = vsub.s32 1, %v960
        %v962 = vrot.slane %v953, %v961
        %v963 = vlaneseq
        %v964 = vshrl.u32 %v963, 7
        %v965 = vsub.s32 2, %v964
        %v966 = vrot.slane %v953, %v965
        %v970 = vmul.f32 %v950, %v958
        %v971 = vmul.f32 %v951, %v962
        %v972 = vmul.f32 %v952, %v966
        %v973 = vld [vmem:[%s3] sm:$0x7]
        %v975 = vlaneseq
        %v976 = vshrl.u32 %v975, 7
        %v977 = vsub.s32 0, %v976
        %v978 = vrot.slane %v973, %v977
        %v979 = vlaneseq
        %v980 = vshrl.u32 %v979, 7
        %v981 = vsub.s32 1, %v980
        %v982 = vrot.slane %v973, %v981
        %v983 = vlaneseq
        %v984 = vshrl.u32 %v983, 7
        %v985 = vsub.s32 2, %v984
        %v986 = vrot.slane %v973, %v985
        %v990 = vmul.f32 %v950, %v978
        %v991 = vmul.f32 %v951, %v982
        %v992 = vmul.f32 %v952, %v986
        %995 = vrot.lane.b32.xlu0 %v950, 127
        %v996 = vpop.permute.xlu0 %995
        %997 = vrot.lane.b32.xlu0 %v951, 127
        %v998 = vpop.permute.xlu0 %997
        %vm999 = vcmask 1039360
        %v1000 = vsel %vm999, %v996, %v998
        %1005 = vrot.lane.b32.xlu0 %v990, 126
        %v1006 = vpop.permute.xlu0 %1005
        %1007 = vrot.lane.b32.xlu0 %v991, 126
        %v1008 = vpop.permute.xlu0 %1007
        %vm1009 = vcmask 1031168
        %v1010 = vsel %vm1009, %v1006, %v1008
        %1015 = vrot.lane.b32.xlu0 %v970, 112
        %v1016 = vpop.permute.xlu0 %1015
        %1017 = vrot.lane.b32.xlu0 %v971, 112
        %v1018 = vpop.permute.xlu0 %1017
        %vm1019 = vcmask 916480
        %v1020 = vsel %vm1019, %v1016, %v1018
        %1023 = vrot.lane.b32.xlu0 %v951, 111
        %v1024 = vpop.permute.xlu0 %1023
        %1027 = vrot.lane.b32.xlu0 %v991, 110
        %v1028 = vpop.permute.xlu0 %1027
        %1029 = vrot.lane.b32.xlu0 %v992, 110
        %v1030 = vpop.permute.xlu0 %1029
        %vm1031 = vcmask 900096
        %v1032 = vsel %vm1031, %v1028, %v1030
        %1036 = vrot.lane.b32.xlu0 %v971, 96
        %v1037 = vpop.permute.xlu0 %1036
        %1038 = vrot.lane.b32.xlu0 %v972, 96
        %v1039 = vpop.permute.xlu0 %1038
        %vm1040 = vcmask 785408
        %v1041 = vsel %vm1040, %v1037, %v1039
        %1045 = vrot.lane.b32.xlu0 %v951, 95
        %v1046 = vpop.permute.xlu0 %1045
        %1047 = vrot.lane.b32.xlu0 %v952, 95
        %v1048 = vpop.permute.xlu0 %1047
        %vm1049 = vcmask 777216
        %v1050 = vsel %vm1049, %v1046, %v1048
        %1053 = vrot.lane.b32.xlu0 %v991, 94
        %v1054 = vpop.permute.xlu0 %1053
        %1055 = vrot.lane.b32.xlu0 %v992, 94
        %v1056 = vpop.permute.xlu0 %1055
        %vm1057 = vcmask 769024
        %v1058 = vsel %vm1057, %v1054, %v1056
        %v1061 = vpack.c.bf16 %v1000, %v970
        %v1062 = vpack.c.bf16 %v998, %v971
        %v1063 = vpack.c.bf16 %v1020, %v1010
        %v1064 = vpack.c.bf16 %v1018, %v1008
        %v1065 = vpack.c.bf16 %v1028, %v1024
        %v1066 = vpack.c.bf16 %v1032, %v1024
        %v1067 = vpack.c.bf16 %v1046, %v1037
        %v1068 = vpack.c.bf16 %v1050, %v1041
        %v1069 = vpack.c.bf16 %v1054, %v1054
        %v1070 = vpack.c.bf16 %v1058, %v1058
        %v1071 = vld [vmem:[%s9] sm:$0xf]
        %v1072 = vld [vmem:[%s10] sm:$0xff]
        %1074 = vset.pattern.permute.xlu0 0
        %1075 = vperm.xlu0 %1074, %v1072
        %v1076 = vpop.permute.xlu0 %1075
        %1088 = vrot.lane.b32.xlu0 %v1061, 17
        %v1089 = vpop.permute.xlu0 %1088
        %1090 = vrot.lane.b32.xlu0 %v1062, 17
        %v1091 = vpop.permute.xlu0 %1090
        %1092 = vrot.lane.b32.xlu0 %v1063, 17
        %v1093 = vpop.permute.xlu0 %1092
        %1094 = vrot.lane.b32.xlu0 %v1064, 17
        %v1095 = vpop.permute.xlu0 %1094
        %1096 = vrot.lane.b32.xlu0 %v1065, 17
        %v1097 = vpop.permute.xlu0 %1096
        %1098 = vrot.lane.b32.xlu0 %v1066, 17
        %v1099 = vpop.permute.xlu0 %1098
        %1100 = vrot.lane.b32.xlu0 %v1067, 17
        %v1101 = vpop.permute.xlu0 %1100
        %1102 = vrot.lane.b32.xlu0 %v1068, 17
        %v1103 = vpop.permute.xlu0 %1102
        %1104 = vrot.lane.b32.xlu0 %v1069, 17
        %v1105 = vpop.permute.xlu0 %1104
        %1106 = vrot.lane.b32.xlu0 %v1070, 17
        %v1107 = vpop.permute.xlu0 %1106
        %vm1108 = vcmask 138240
        %v1109 = vsel %vm1108, %v1089, %v1091
        %v1110 = vsel %vm1108, %v1093, %v1095
        %v1111 = vsel %vm1108, %v1097, %v1099
        %v1112 = vsel %vm1108, %v1101, %v1103
        %v1113 = vsel %vm1108, %v1105, %v1107
        %vm1118 = vcmask 588800
        %v1120 = vsel %vm1118, %v1071, 0
        %v1123 = vsel %vm827, %v1113, 0
        %1125 = vmatprep.subr.bf16.mxu0 0
        %1126 = vmatpush1.bf16.msra.mxu0 %v1109
        %1127 = vmatprep.subr.bf16.mxu0 0
        %1128 = vmatpush1.bf16.msra.mxu0 %v1110
        %1129 = vmatprep.subr.bf16.mxu0 0
        %1130 = vmatpush1.bf16.msra.mxu0 %v1111
        %1131 = vmatprep.subr.bf16.mxu0 0
        %1132 = vmatpush1.bf16.msra.mxu0 %v1112
        %1133 = vmatprep.subr.bf16.mxu0 0
        %1134 = vmatpush1.bf16.msra.mxu0 %v1123
        %1135 = vmatprep.subr.bf16.mxu0 0
        %1136 = vmatpush1.bf16.msra.mxu0 0
        %1137 = vmatprep.subr.bf16.mxu0 0
        %1138 = vmatpush1.bf16.msra.mxu0 0
        %1139 = vmatprep.subr.bf16.mxu0 0
        %1140 = vmatpush1.bf16.msra.mxu0 0
        %1141 = vmatprep.subr.bf16.mxu0 0
        %1142 = vmatpush1.bf16.msra.mxu0 0
        %1143 = vmatprep.subr.bf16.mxu0 0
        %1144 = vmatpush1.bf16.msra.mxu0 0
        %1145 = vmatprep.subr.bf16.mxu0 0
        %1146 = vmatpush1.bf16.msra.mxu0 0
        %1147 = vmatprep.subr.bf16.mxu0 0
        %1148 = vmatpush1.bf16.msra.mxu0 0
        %1149 = vmatprep.subr.bf16.mxu0 0
        %1150 = vmatpush1.bf16.msra.mxu0 0
        %1151 = vmatprep.subr.bf16.mxu0 0
        %1152 = vmatpush1.bf16.msra.mxu0 0
        %1153 = vmatprep.subr.bf16.mxu0 0
        %1154 = vmatpush1.bf16.msra.mxu0 0
        %1155 = vmatprep.subr.bf16.mxu0 0
        %1156 = vmatpush1.bf16.msra.mxu0 0
        %1157 = vmatprep.mubr.bf16.mxu0 0
        %1158 = vmatmul.mubr.bf16.gmra.mrb[0].mxu0 %v1120
        %v1159 = vpop.f32.mrb[0].mxu0
        %v1160 = vadd.f32 %v1076, %v1159
        %v1161 = vpop.f32.mrb[0].mxu0
        %v1162 = vpop.f32.mrb[0].mxu0
        %v1163 = vpop.f32.mrb[0].mxu0
        %1164 = vdwg.mxu0
        %v1165 = vadd.f32 %v1160, 3.0
        %v1166 = vmax.f32 %v1165, 0.0
        %v1167 = vmin.f32 %v1166, 6.0
        %v1168 = vmul.f32 %v1160, %v1167
        %v1169 = vmul.f32 %v1168, 0.16666667
        %v1170 = vadd.f32 %v811, %v1169
        %v1171 = vld [vmem:[%s11] sm:$0xf]
        %v1172 = vpack.c.bf16 %v1170, %v1170
        %v1173 = vld [vmem:[%s12] sm:$0xff]
        %1175 = vset.pattern.permute.xlu0 0
        %1176 = vperm.xlu0 %1175, %v1173
        %v1177 = vpop.permute.xlu0 %1176
        %v1180 = vsel %vm823, %v1171, 0
        %v1183 = vsel %vm827, %v1172, 0
        %1185 = vmatprep.subr.bf16.mxu0 0
        %1186 = vmatpush1.bf16.msra.mxu0 %v1183
        %1187 = vmatprep.subr.bf16.mxu0 0
        %1188 = vmatpush1.bf16.msra.mxu0 0
        %1189 = vmatprep.subr.bf16.mxu0 0
        %1190 = vmatpush1.bf16.msra.mxu0 0
        %1191 = vmatprep.subr.bf16.mxu0 0
        %1192 = vmatpush1.bf16.msra.mxu0 0
        %1193 = vmatprep.subr.bf16.mxu0 0
        %1194 = vmatpush1.bf16.msra.mxu0 0
        %1195 = vmatprep.subr.bf16.mxu0 0
        %1196 = vmatpush1.bf16.msra.mxu0 0
        %1197 = vmatprep.subr.bf16.mxu0 0
        %1198 = vmatpush1.bf16.msra.mxu0 0
        %1199 = vmatprep.subr.bf16.mxu0 0
        %1200 = vmatpush1.bf16.msra.mxu0 0
        %1201 = vmatprep.subr.bf16.mxu0 0
        %1202 = vmatpush1.bf16.msra.mxu0 0
        %1203 = vmatprep.subr.bf16.mxu0 0
        %1204 = vmatpush1.bf16.msra.mxu0 0
        %1205 = vmatprep.subr.bf16.mxu0 0
        %1206 = vmatpush1.bf16.msra.mxu0 0
        %1207 = vmatprep.subr.bf16.mxu0 0
        %1208 = vmatpush1.bf16.msra.mxu0 0
        %1209 = vmatprep.subr.bf16.mxu0 0
        %1210 = vmatpush1.bf16.msra.mxu0 0
        %1211 = vmatprep.subr.bf16.mxu0 0
        %1212 = vmatpush1.bf16.msra.mxu0 0
        %1213 = vmatprep.subr.bf16.mxu0 0
        %1214 = vmatpush1.bf16.msra.mxu0 0
        %1215 = vmatprep.subr.bf16.mxu0 0
        %1216 = vmatpush1.bf16.msra.mxu0 0
        %1217 = vmatprep.mubr.bf16.mxu0 0
        %1218 = vmatmul.mubr.bf16.gmra.mrb[0].mxu0 %v1180
        %v1219 = vpop.f32.mrb[0].mxu0
        %v1220 = vadd.f32 %v1177, %v1219
        %v1221 = vpop.f32.mrb[0].mxu0
        %v1222 = vpop.f32.mrb[0].mxu0
        %v1223 = vpop.f32.mrb[0].mxu0
        %1224 = vdwg.mxu0
        %vm1225 = vcmp.gt.f32.partialorder %v1220, 0.0
        %v1226 = vmul.f32 %v1220, 0.1
        %v1227 = vsel %vm1225, %v1220, %v1226
        %v1228 = vld [vmem:[%s6] sm:$0xff]
        %1230 = vset.pattern.permute.xlu0 0
        %1231 = vperm.xlu0 %1230, %v1228
        %v1232 = vpop.permute.xlu0 %1231
        %v1234 = vadd.f32 %v747, %v1232
        %vm1235 = vcmp.gt.f32.partialorder %v1234, 0.0
        %v1236 = vmul.f32 %v1234, 0.1
        %v1237 = vsel %vm1235, %v1234, %v1236
        %v1238 = vld [vmem:[%s13] sm:$0xf]
        %v1239 = vld [vmem:[%s13 + $0x4] sm:$0xf]
        %v1240 = vpack.c.bf16 %v1227, %v1227
        %v1241 = vld [vmem:[%s14] sm:$0xf]
        %v1242 = vld [vmem:[%s14 + $0x4] sm:$0xf]
        %v1243 = vpack.c.bf16 %v1237, %v1237
        %v1246 = vunpack.c.l.b16 %v1241
        %v1247 = vunpack.c.l.b16 %v1242
        %v1248 = vpack.c.b16 %v1247, %v1246
        %v1250 = vsel %vm823, %v1248, 0
        %v1253 = vsel %vm827, %v1243, 0
        %1255 = vmatprep.subr.bf16.mxu0 0
        %1256 = vmatpush1.bf16.msra.mxu0 %v1253
        %1257 = vmatprep.subr.bf16.mxu0 0
        %1258 = vmatpush1.bf16.msra.mxu0 0
        %1259 = vmatprep.subr.bf16.mxu0 0
        %1260 = vmatpush1.bf16.msra.mxu0 0
        %1261 = vmatprep.subr.bf16.mxu0 0
        %1262 = vmatpush1.bf16.msra.mxu0 0
        %1263 = vmatprep.subr.bf16.mxu0 0
        %1264 = vmatpush1.bf16.msra.mxu0 0
        %1265 = vmatprep.subr.bf16.mxu0 0
        %1266 = vmatpush1.bf16.msra.mxu0 0
        %1267 = vmatprep.subr.bf16.mxu0 0
        %1268 = vmatpush1.bf16.msra.mxu0 0
        %1269 = vmatprep.subr.bf16.mxu0 0
        %1270 = vmatpush1.bf16.msra.mxu0 0
        %1271 = vmatprep.subr.bf16.mxu0 0
        %1272 = vmatpush1.bf16.msra.mxu0 0
        %1273 = vmatprep.subr.bf16.mxu0 0
        %1274 = vmatpush1.bf16.msra.mxu0 0
        %1275 = vmatprep.subr.bf16.mxu0 0
        %1276 = vmatpush1.bf16.msra.mxu0 0
        %1277 = vmatprep.subr.bf16.mxu0 0
        %1278 = vmatpush1.bf16.msra.mxu0 0
        %1279 = vmatprep.subr.bf16.mxu0 0
        %1280 = vmatpush1.bf16.msra.mxu0 0
        %1281 = vmatprep.subr.bf16.mxu0 0
        %1282 = vmatpush1.bf16.msra.mxu0 0
        %1283 = vmatprep.subr.bf16.mxu0 0
        %1284 = vmatpush1.bf16.msra.mxu0 0
        %1285 = vmatprep.subr.bf16.mxu0 0
        %1286 = vmatpush1.bf16.msra.mxu0 0
        %1287 = vmatprep.mubr.bf16.mxu0 0
        %1288 = vmatmul.mubr.bf16.gmra.mrb[0].mxu0 %v1250
        %v1289 = vpop.f32.mrb[0].mxu0
        %v1290 = vadd.f32 0.0, %v1289
        %v1291 = vpop.f32.mrb[0].mxu0
        %v1292 = vpop.f32.mrb[0].mxu0
        %v1293 = vadd.f32 0.0, %v1292
        %v1294 = vpop.f32.mrb[0].mxu0
        %1295 = vdwg.mxu0
        %v1298 = vunpack.c.l.b16 %v1238
        %v1299 = vunpack.c.l.b16 %v1239
        %v1300 = vpack.c.b16 %v1299, %v1298
        %v1302 = vsel %vm823, %v1300, 0
        %v1305 = vsel %vm827, %v1240, 0
        %1307 = vmatprep.subr.bf16.mxu0 0
        %1308 = vmatpush1.bf16.msra.mxu0 %v1305
        %1309 = vmatprep.subr.bf16.mxu0 0
        %1310 = vmatpush1.bf16.msra.mxu0 0
        %1311 = vmatprep.subr.bf16.mxu0 0
        %1312 = vmatpush1.bf16.msra.mxu0 0
        %1313 = vmatprep.subr.bf16.mxu0 0
        %1314 = vmatpush1.bf16.msra.mxu0 0
        %1315 = vmatprep.subr.bf16.mxu0 0
        %1316 = vmatpush1.bf16.msra.mxu0 0
        %1317 = vmatprep.subr.bf16.mxu0 0
        %1318 = vmatpush1.bf16.msra.mxu0 0
        %1319 = vmatprep.subr.bf16.mxu0 0
        %1320 = vmatpush1.bf16.msra.mxu0 0
        %1321 = vmatprep.subr.bf16.mxu0 0
        %1322 = vmatpush1.bf16.msra.mxu0 0
        %1323 = vmatprep.subr.bf16.mxu0 0
        %1324 = vmatpush1.bf16.msra.mxu0 0
        %1325 = vmatprep.subr.bf16.mxu0 0
        %1326 = vmatpush1.bf16.msra.mxu0 0
        %1327 = vmatprep.subr.bf16.mxu0 0
        %1328 = vmatpush1.bf16.msra.mxu0 0
        %1329 = vmatprep.subr.bf16.mxu0 0
        %1330 = vmatpush1.bf16.msra.mxu0 0
        %1331 = vmatprep.subr.bf16.mxu0 0
        %1332 = vmatpush1.bf16.msra.mxu0 0
        %1333 = vmatprep.subr.bf16.mxu0 0
        %1334 = vmatpush1.bf16.msra.mxu0 0
        %1335 = vmatprep.subr.bf16.mxu0 0
        %1336 = vmatpush1.bf16.msra.mxu0 0
        %1337 = vmatprep.subr.bf16.mxu0 0
        %1338 = vmatpush1.bf16.msra.mxu0 0
        %1339 = vmatprep.mubr.bf16.mxu0 0
        %1340 = vmatmul.mubr.bf16.gmra.mrb[0].mxu0 %v1302
        %v1341 = vpop.f32.mrb[0].mxu0
        %v1342 = vadd.f32 %v1290, %v1341
        %v1343 = vpop.f32.mrb[0].mxu0
        %v1344 = vpop.f32.mrb[0].mxu0
        %v1345 = vadd.f32 %v1293, %v1344
        %v1346 = vpop.f32.mrb[0].mxu0
        %1347 = vdwg.mxu0
        %v1348 = vld [vmem:[%s15] sm:$0xff]
        %v1349 = vld [vmem:[%s15 + $0x8] sm:$0xff]
        %1351 = vset.pattern.permute.xlu0 0
        %1352 = vperm.xlu0 %1351, %v1348
        %v1353 = vpop.permute.xlu0 %1352
        %1356 = vset.pattern.permute.xlu0 0
        %1357 = vperm.xlu0 %1356, %v1349
        %v1358 = vpop.permute.xlu0 %1357
        %v1360 = vadd.f32 %v1342, %v1353
        %v1361 = vadd.f32 %v1345, %v1358
        %v1362 = vadd.f32 %v1360, 3.0
        %v1363 = vadd.f32 %v1361, 3.0
        %v1364 = vmax.f32 %v1362, 0.0
        %v1365 = vmax.f32 %v1363, 0.0
        %v1366 = vmin.f32 %v1364, 6.0
        %v1367 = vmin.f32 %v1365, 6.0
        %v1368 = vmul.f32 %v1360, %v1366
        %v1369 = vmul.f32 %v1361, %v1367
        %v1370 = vmul.f32 %v1368, 0.16666667
        %v1371 = vmul.f32 %v1369, 0.16666667
        %1372 = vst [vmem:[%s496] sm:$0xff] %v1370
        %1373 = vst [vmem:[%s496 + $0x8] sm:$0xff] %v1371
        %s1374 = sand.u32 %s369, 1
        %s1375 = sand.u32 %s369, 1
        %s1376 = smul.addr %s1375, 16
        %s1377 = scalar_lea.vmem [#allocation4], %s1376
        // Predicated region
        $region163: #{_forward_impl.1} parent=79 // pred_check
          %p1378 = pneg %p379
        $region164: #{_forward_impl.1} parent=79 // pred_check_branch
          %1380 = sbr.rel (%p1378) target = $region166
        $region165: #{_forward_impl.1} parent=79 // pred_region
          %s1381 = smul.addr %s31, 4
          %s1382 = sadd.s32 %s32, %s1381
          %s1383 = smul.addr %s1382, 8
          %s1384 = scalar_lea.vmem %s16, %s1383
          // Predicated region
          $region167: #{_forward_impl.1} parent=165 // pred_check
            _
          $region168: #{_forward_impl.1} parent=165 // pred_check_branch
            %1386 = sbr.rel (0) target = $region170
          $region169: #{_forward_impl.1} parent=165 // pred_region
            // Predicated region
            $region171: #{_forward_impl.1} parent=169 // pred_check
              _
            $region172: #{_forward_impl.1} parent=169 // pred_check_branch
              %1388 = sbr.rel (0) target = $region174
            $region173: #{_forward_impl.1} parent=169 // pred_region
              // Predicated region
              $region186: #{_forward_impl.1} parent=173 // pred_check
                _
              $region187: #{_forward_impl.1} parent=173 // pred_check_branch
                %1405 = sbr.rel (0) target = $region189
              $region188: #{_forward_impl.1} parent=173 // pred_region
                loop: start=0, step=1, limit=1
                $region190: #{_forward_impl.1} parent=188 // loop_pre_header
                  _
                $region191: #{_forward_impl.1} parent=188 // loop_header
                  %s1407 = sphi 0, %s1411
                  %p1408 = scmp.ge.s32.totalorder %s1407, 1
                  %s1412 = sphi %s1377, %s1377
                  %s1413 = sphi %s1384, %s1384
                $region192: #{_forward_impl.1} parent=188 // loop_header_branch
                  %1410 = sbr.rel (%p1408) target = $region196
                $region193: #{_forward_impl.1} parent=188 // loop_body
                  %v1414 = vld [vmem:[%s1412] sm:$0xff]
                  %1415 = vst [vmem:[%s1413] sm:$0xff] %v1414
                  %v1416 = vld [vmem:[%s1412 + $0x8] sm:$0xff]
                  %1417 = vst [vmem:[%s1413 + $0x10] sm:$0xff] %v1416
                $region194: #{_forward_impl.1} parent=188 // loop_footer
                  %s1411 = sadd.s32 1, %s1407
                $region195: #{_forward_impl.1} parent=188 // loop_footer_branch
                  %1406 = sbr.rel target = $region191
                $region196: #{_forward_impl.1} parent=188 // loop_exit
                  _
              $region189: #{_forward_impl.1} parent=173 // pred_fallthru
                _
              // Predicated region
              $region197: #{_forward_impl.1} parent=173 // pred_check
                _
              $region198: #{_forward_impl.1} parent=173 // pred_check_branch
                %1419 = sbr.rel target = $region200
              $region199: #{_forward_impl.1} parent=173 // pred_region
                _
              $region200: #{_forward_impl.1} parent=173 // pred_fallthru
                _
            $region174: #{_forward_impl.1} parent=169 // pred_fallthru
              _
            // Predicated region
            $region175: #{_forward_impl.1} parent=169 // pred_check
              _
            $region176: #{_forward_impl.1} parent=169 // pred_check_branch
              %1390 = sbr.rel target = $region178
            $region177: #{_forward_impl.1} parent=169 // pred_region
              loop: start=0, step=1, limit=1
              $region179: #{_forward_impl.1} parent=177 // loop_pre_header
                _
              $region180: #{_forward_impl.1} parent=177 // loop_header
                %s1393 = sphi 0, %s1397
                %p1394 = scmp.ge.s32.totalorder %s1393, 1
                %s1398 = sphi %s1377, %s1377
                %s1399 = sphi %s1384, %s1384
              $region181: #{_forward_impl.1} parent=177 // loop_header_branch
                %1396 = sbr.rel (%p1394) target = $region185
              $region182: #{_forward_impl.1} parent=177 // loop_body
                %v1400 = vld [vmem:[%s1398] sm:$0xff]
                %1401 = vst [vmem:[%s1399] sm:$0xff] %v1400
                %v1402 = vld [vmem:[%s1398 + $0x8] sm:$0xff]
                %1403 = vst [vmem:[%s1399 + $0x10] sm:$0xff] %v1402
              $region183: #{_forward_impl.1} parent=177 // loop_footer
                %s1397 = sadd.s32 1, %s1393
              $region184: #{_forward_impl.1} parent=177 // loop_footer_branch
                %1392 = sbr.rel target = $region180
              $region185: #{_forward_impl.1} parent=177 // loop_exit
                _
            $region178: #{_forward_impl.1} parent=169 // pred_fallthru
              _
          $region170: #{_forward_impl.1} parent=165 // pred_fallthru
            _
          %1420 = vnop
        $region166: #{_forward_impl.1} parent=79 // pred_fallthru
          _
      $region80: #{_forward_impl.1} parent=5 // pred_fallthru
        _
      %p1421 = scmp.le.s32.totalorder 2, %s22
      // Predicated region
      $region201: #{_forward_impl.1} parent=5 // pred_check
        %p1422 = pneg %p1421
      $region202: #{_forward_impl.1} parent=5 // pred_check_branch
        %1424 = sbr.rel (%p1422) target = $region204
      $region203: #{_forward_impl.1} parent=5 // pred_region
        %s1425 = ssub.s32 %s22, 2
        // Predicated region
        $region205: #{_forward_impl.1} parent=203 // pred_check
          %p1426 = pneg %p385
        $region206: #{_forward_impl.1} parent=203 // pred_check_branch
          %1428 = sbr.rel (%p1426) target = $region208
        $region207: #{_forward_impl.1} parent=203 // pred_region
          %s1429 = sand.u32 %s370, 1
          %s1430 = sand.u32 %s370, 1
          %s1431 = smul.addr %s1430, 16
          %s1432 = scalar_lea.vmem [#allocation4], %s1431
        $region208: #{_forward_impl.1} parent=203 // pred_fallthru
          _
      $region204: #{_forward_impl.1} parent=5 // pred_fallthru
        _
    $region6: #{_forward_impl.1} parent=1 // loop_footer
      %s26 = sadd.s32 1, %s22
    $region7: #{_forward_impl.1} parent=1 // loop_footer_branch
      %21 = sbr.rel target = $region3
    $region8: #{_forward_impl.1} parent=1 // loop_exit
      _
  %1433 = vsyncmov [#allocation3]
  %s1434 = vpop.sfrf %1433
  %p1435 = scmp.eq.s32.totalorder %s1434, 0
  %p1436 = pneg %p1435
  %1438 = shalt.err (%p1436)
  %s1439 = scalar_lea.sflag [#allocation3], 1
  %1440 = vsyncmov %s1439
  %s1441 = vpop.sfrf %1440
  %p1442 = scmp.eq.s32.totalorder %s1441, 0
  %p1443 = pneg %p1442
  %1445 = shalt.err (%p1443)

</llo_original>
